<compile_context>
chip_gen: v6e
topology: v6e:2x2x1
jax: 0.10.0
libtpu: 0.0.40
codegen_flags: <defaults>
</compile_context>

<pallas_src>
import jax
import jax.numpy as jnp
from jax.experimental import pallas as pl
from jax.experimental.pallas import tpu as pltpu


# ----------------------------------------------------------------------------
# Generation-aware VMEM budgeting
# ----------------------------------------------------------------------------
def _cdiv(a, b):
    return -(-a // b)


def _round_up(a, b):
    return _cdiv(a, b) * b


try:  # trace-time hardware query; fall back conservatively if unavailable
    _VMEM_CAP = int(pltpu.get_tpu_info().vmem_capacity_bytes)
except Exception:  # noqa: BLE001 - e.g. interpret mode on a non-TPU host
    _VMEM_CAP = 64 * 1024 * 1024            # conservative: v7x per-TensorCore

# Streamed-block budget per grid step (double-buffered inputs/outputs plus the
# resident weight blocks must fit).  8 MiB on 64 MiB-VMEM parts (v7x), 32 MiB
# on the 128 MiB parts (v5e/v6e) to reach the 512-1024-row roofline regime.
_VMEM_STEP_BUDGET = 8 * 2**20 if _VMEM_CAP <= 64 * 2**20 else 32 * 2**20
_VMEM_LIMIT = min(_VMEM_CAP // 2, 64 * 2**20)
_MAX_TILE_M = 1024                          # 512-1024 rows ~ HBM-roofline sweet spot


def _pick_tile(m, stream_row_bytes, resident_bytes, granule=8):
    """Largest row tile (multiple of `granule`, <= _MAX_TILE_M) such that the
    double-buffered streamed blocks PLUS the (double-buffered) resident weight
    blocks fit the per-step VMEM budget.  Additionally caps the tile so the
    grid has >= 2 steps whenever there is enough work, so v7x's second
    TensorCore gets half the rows (no effect on single-TC v5e/v6e)."""
    budget = max(_VMEM_STEP_BUDGET - 2 * resident_bytes,
                 2 * granule * stream_row_bytes)
    t = (budget // (2 * stream_row_bytes) // granule) * granule
    t = max(granule, min(t, _MAX_TILE_M))
    if m > 2 * granule:                     # enough rows -> force >= 2 grid steps
        t = min(t, _round_up(_cdiv(m, 2), granule))
    return min(t, m)


def _pick_tile_k(K, L):
    """Split the FC reduction dim when the (K, L) bf16 weight would not fit
    comfortably in VMEM; the weight is then streamed in (tile_k, L) blocks.
    tile_k must divide K and be a multiple of 128 so no reduction block ever
    reads padded garbage."""
    limit = min(8 * 2**20, _VMEM_STEP_BUDGET // 2)
    if 2 * K * L <= limit or K < 256:
        return K
    target = max(128, limit // (4 * L))     # double-buffered bf16 weight blocks
    best, cand = 0, 128
    while cand <= min(K, target):
        if K % cand == 0:
            best = cand
        cand += 128
    return best if best else K


# ----------------------------------------------------------------------------
# Pallas kernel 1: conv-as-matmul  relu(X @ W + b)   (bf16 in, bf16 out)
# ----------------------------------------------------------------------------
def _conv_dense_kernel(x_ref, w_ref, b_ref, o_ref):
    # bf16 x bf16 on the MXU, f32 accumulation; bias + ReLU in f32 on the VPU.
    y = jnp.dot(x_ref[...], w_ref[...], preferred_element_type=jnp.float32)
    o_ref[...] = jnp.maximum(y + b_ref[...], 0.0).astype(o_ref.dtype)


def pallas_conv_dense(x, w, b):
    """x: [M, K] bf16 patches, w: [K, N] bf16, b: [N] f32 -> relu(x@w+b) bf16.

    When N divides 128 the problem is repacked as
        X.reshape(M/p, p*K) @ blockdiag_p(W)  with  p = 128/N,
    so the Pallas output block is lane-dense (last dim 128 -> unmasked vst)
    with identical HBM bytes; the (M/p, 128) result is a row-major no-op view
    of the (M, N) output.  Extra MXU flops on the block-diag zeros are free for
    these memory-bound layers."""
    M, K = x.shape
    N = w.shape[1]

    pack = 128 // N if (N < 128 and 128 % N == 0 and M % (128 // N) == 0) else 1
    if pack > 1:
        x = x.reshape(M // pack, pack * K)                       # free HBM view
        w = jnp.kron(jnp.eye(pack, dtype=w.dtype), w)            # [p*K, 128] block-diag
        b = jnp.tile(b, pack)                                    # [128]

    Mp, Kp = x.shape
    Np = w.shape[1]

    tile_m = _pick_tile(
        Mp,
        stream_row_bytes=2 * Kp + 2 * Np,                        # bf16 X row + bf16 out row
        resident_bytes=2 * Kp * Np + 4 * Np,                     # bf16 weights + f32 bias
    )
    grid = (pl.cdiv(Mp, tile_m),)

    cost = pl.CostEstimate(
        flops=2 * Mp * Kp * Np,
        transcendentals=0,
        bytes_accessed=2 * (Mp * Kp + Kp * Np + Mp * Np) + 4 * Np,
    )
    out = pl.pallas_call(
        _conv_dense_kernel,
        out_shape=jax.ShapeDtypeStruct((Mp, Np), jnp.bfloat16),
        grid=grid,
        in_specs=[
            pl.BlockSpec((tile_m, Kp), lambda i: (i, 0)),        # streamed row tiles
            pl.BlockSpec((Kp, Np), lambda i: (0, 0)),            # weights resident
            pl.BlockSpec((1, Np), lambda i: (0, 0)),             # bias resident
        ],
        out_specs=pl.BlockSpec((tile_m, Np), lambda i: (i, 0)),  # lane-dense (128) stores
        compiler_params=pltpu.CompilerParams(
            dimension_semantics=("parallel",),
            vmem_limit_bytes=_VMEM_LIMIT,
            allow_input_fusion=[True, False, False],             # fuse im2col into input
        ),
        cost_estimate=cost,
    )(x, w, b.reshape(1, Np))
    return out.reshape(M, N)


# ----------------------------------------------------------------------------
# Pallas kernel 2: fused head  softmax(relu(h @ Wfc + bfc) @ Wdec + bdec)
# K-split reduction over the FC weight with an f32 VMEM accumulator.
# ----------------------------------------------------------------------------
def _head_kernel(h_ref, wfc_ref, bfc_ref, wdec_ref, bdec_ref, o_ref, acc_ref):
    k = pl.program_id(1)

    @pl.when(k == 0)
    def _():
        acc_ref[...] = jnp.zeros_like(acc_ref)

    acc_ref[...] += jnp.dot(h_ref[...], wfc_ref[...],
                            preferred_element_type=jnp.float32)

    @pl.when(k == pl.num_programs(1) - 1)
    def _():
        lat = jnp.maximum(acc_ref[...] + bfc_ref[...], 0.0)       # FC bias + ReLU (f32)
        # tiny (tile_b, L) x (L, C) decoder product kept fully in f32 (no bf16
        # cast of the latent -> no extra precision loss on the logits)
        logits = jnp.dot(lat, wdec_ref[...],
                         preferred_element_type=jnp.float32) + bdec_ref[...]
        logits = logits - jnp.max(logits, axis=-1, keepdims=True)
        e = jnp.exp(logits)
        # exact normalization (approx reciprocal broke the row-sum tolerance)
        o_ref[...] = (e / jnp.sum(e, axis=-1, keepdims=True)).astype(o_ref.dtype)


def pallas_head(h, w_fc, b_fc, w_dec, b_dec):
    """h: [B, K] bf16 -> probs [B, C] f32 (FC+ReLU+decoder+softmax, one call)."""
    B, K = h.shape
    L = w_fc.shape[1]
    C = w_dec.shape[1]

    tile_k = _pick_tile_k(K, L)
    if K % tile_k:
        tile_k = K
    nk = K // tile_k

    tile_b = _pick_tile(
        B,
        stream_row_bytes=2 * tile_k + 4 * C + 4 * L,             # h row + out row + acc row
        resident_bytes=2 * tile_k * L + 4 * (L + L * C + C),     # fc block + biases + dec
    )
    grid = (pl.cdiv(B, tile_b), nk)

    cost = pl.CostEstimate(
        flops=2 * B * (K * L + L * C),
        transcendentals=B * C,
        bytes_accessed=2 * (B * K + K * L) + 4 * (L + L * C + C + B * C),
    )
    return pl.pallas_call(
        _head_kernel,
        out_shape=jax.ShapeDtypeStruct((B, C), jnp.float32),
        grid=grid,
        in_specs=[
            pl.BlockSpec((tile_b, tile_k), lambda i, k: (i, k)),
            pl.BlockSpec((tile_k, L), lambda i, k: (k, 0)),      # streamed fc weight
            pl.BlockSpec((1, L), lambda i, k: (0, 0)),
            pl.BlockSpec((L, C), lambda i, k: (0, 0)),
            pl.BlockSpec((1, C), lambda i, k: (0, 0)),
        ],
        out_specs=pl.BlockSpec((tile_b, C), lambda i, k: (i, 0)),
        scratch_shapes=[pltpu.VMEM((tile_b, L), jnp.float32)],
        compiler_params=pltpu.CompilerParams(
            dimension_semantics=("parallel", "arbitrary"),
            vmem_limit_bytes=_VMEM_LIMIT,
            allow_input_fusion=[True, False, False, False, False],
        ),
        cost_estimate=cost,
    )(h, w_fc, b_fc.reshape(1, L), w_dec, b_dec.reshape(1, C))


# ----------------------------------------------------------------------------
# JAX glue: im2col for stride-s, padded KxK conv (NHWC, bf16 patches)
# ----------------------------------------------------------------------------
def im2col(x_nhwc, k, stride, pad):
    x = jnp.pad(x_nhwc, ((0, 0), (pad, pad), (pad, pad), (0, 0)))
    B, H, W, C = x.shape
    oh = (H - k) // stride + 1
    ow = (W - k) // stride + 1
    cols = []
    for i in range(k):
        for j in range(k):
            cols.append(x[:, i:i + stride * oh:stride, j:j + stride * ow:stride, :])
    patches = jnp.concatenate(cols, axis=-1)            # [B, oh, ow, k*k*C]
    return patches.reshape(B * oh * ow, k * k * C), oh, ow


# ----------------------------------------------------------------------------
# Parameter init (deterministic, PyTorch-style uniform(-1/sqrt(fan_in), ...))
# Conv / FC weights stored pre-flattened [kh*kw*Cin, Cout] and pre-cast to bf16
# (MXU operands); decoder weight and all biases stay f32.
# ----------------------------------------------------------------------------
def _uniform(key, shape, fan_in):
    bound = 1.0 / (fan_in ** 0.5)
    return jax.random.uniform(key, shape, jnp.float32, -bound, bound)


def init_params(key, img_size, in_channel, latent_dim, nr_classes):
    c1, c2 = 32, 64
    s4 = img_size // 4                                    # two stride-2 convs
    ks = jax.random.split(key, 8)
    bf16 = jnp.bfloat16
    return {
        "conv1_w": _uniform(ks[0], (3 * 3 * in_channel, c1), 3 * 3 * in_channel).astype(bf16),
        "conv1_b": _uniform(ks[1], (c1,), 3 * 3 * in_channel),
        "conv2_w": _uniform(ks[2], (3 * 3 * c1, c2), 3 * 3 * c1).astype(bf16),
        "conv2_b": _uniform(ks[3], (c2,), 3 * 3 * c1),
        "fc_w":    _uniform(ks[4], (c2 * s4 * s4, latent_dim), c2 * s4 * s4).astype(bf16),
        "fc_b":    _uniform(ks[5], (latent_dim,), c2 * s4 * s4),
        "dec_w":   _uniform(ks[6], (latent_dim, nr_classes), latent_dim),   # f32
        "dec_b":   _uniform(ks[7], (nr_classes,), latent_dim),
    }


# ----------------------------------------------------------------------------
# Classifier forward pass
# ----------------------------------------------------------------------------
@jax.jit
def classifier_forward(params, x_nchw):
    # NCHW (PyTorch) -> NHWC (kernel layout), bf16 activations throughout.
    x = jnp.transpose(x_nchw, (0, 2, 3, 1)).astype(jnp.bfloat16)
    B = x.shape[0]

    # --- encoder (EncoderConv): conv3x3/s2 + ReLU, conv3x3/s2 + ReLU, FC + ReLU
    # (dropout is an eval-mode identity)
    p, oh, ow = im2col(x, k=3, stride=2, pad=1)
    h = pallas_conv_dense(p, params["conv1_w"], params["conv1_b"])
    h = h.reshape(B, oh, ow, -1)

    p, oh, ow = im2col(h, k=3, stride=2, pad=1)
    h = pallas_conv_dense(p, params["conv2_w"], params["conv2_b"])
    h = h.reshape(B, -1)                                   # flatten (h, w, c)

    # --- decoder != 'ViT' -> reshape(B, -1) is a no-op on [B, latent_dim];
    #     FC(+ReLU) + single_layer decoder + Prediction('multi-class') softmax
    #     fused into one Pallas kernel.
    probs = pallas_head(h, params["fc_w"], params["fc_b"],
                        params["dec_w"], params["dec_b"])
    return probs


# ----------------------------------------------------------------------------
# Pure-JAX reference (same bf16 intermediates) for a correctness check
# ----------------------------------------------------------------------------
@jax.jit
def reference_forward(params, x_nchw):
    x = jnp.transpose(x_nchw, (0, 2, 3, 1)).astype(jnp.bfloat16)
    B = x.shape[0]
    p, oh, ow = im2col(x, 3, 2, 1)
    h = jnp.maximum(jnp.dot(p, params["conv1_w"],
                            preferred_element_type=jnp.float32) + params["conv1_b"],
                    0.0).astype(jnp.bfloat16).reshape(B, oh, ow, -1)
    p, oh, ow = im2col(h, 3, 2, 1)
    h = jnp.maximum(jnp.dot(p, params["conv2_w"],
                            preferred_element_type=jnp.float32) + params["conv2_b"],
                    0.0).astype(jnp.bfloat16).reshape(B, -1)
    lat = jnp.maximum(jnp.dot(h, params["fc_w"],
                              preferred_element_type=jnp.float32) + params["fc_b"], 0.0)
    logits = jnp.dot(lat, params["dec_w"],
                     preferred_element_type=jnp.float32) + params["dec_b"]
    return jax.nn.softmax(logits, axis=-1)


if __name__ == "__main__":
    img_size, in_channel, latent_dim, nr_classes = 16, 4, 32, 8
    batch = 2

    root = jax.random.PRNGKey(0)
    k_param, k_x = jax.random.split(root)
    params = init_params(k_param, img_size, in_channel, latent_dim, nr_classes)
    x = jax.random.normal(k_x, (batch, in_channel, img_size, img_size), jnp.float32)

    out = jax.block_until_ready(classifier_forward(params, x))
    ref = jax.block_until_ready(reference_forward(params, x))

    assert out.shape == (batch, nr_classes), out.shape
    assert bool(jnp.all(jnp.isfinite(out)))
    # exact softmax normalization -> row sums hold to f32 rounding
    assert bool(jnp.allclose(jnp.sum(out, axis=-1), 1.0, atol=1e-4))
    # matches the pure-JAX reference (same bf16 intermediates)
    assert bool(jnp.allclose(out, ref, atol=1e-2, rtol=0.0))
    print("KERNEL_OK")
</pallas_src>

<mosaic_0001>
module attributes {stable_mosaic.version = 11 : i64} {
  func.func @_conv_dense_kernel(%arg0: i32, %arg1: memref<16x144xbf16, #tpu.memory_space<vmem>>, %arg2: memref<144x128xbf16, #tpu.memory_space<vmem>>, %arg3: memref<1x128xf32, #tpu.memory_space<vmem>>, %arg4: memref<16x128xbf16, #tpu.memory_space<vmem>>) attributes {dimension_semantics = [#tpu.dimension_semantics<parallel>], iteration_bounds = array<i64: 2>, scalar_prefetch = 0 : i64, scratch_operands = 0 : i64, tpu.core_type = #tpu.core_type<tc>, window_params = [{transform_indices = @transform_0, window_bounds = array<i64: 16, 144>}, {pipeline_mode = #tpu.pipeline_mode<synchronous>, transform_indices = @transform_1, window_bounds = array<i64: 144, 128>}, {pipeline_mode = #tpu.pipeline_mode<synchronous>, transform_indices = @transform_2, window_bounds = array<i64: 1, 128>}, {transform_indices = @transform_3, window_bounds = array<i64: 16, 128>}]} {
    %c0 = arith.constant 0 : index
    %c0_0 = arith.constant 0 : index
    %0 = vector.load %arg1[%c0, %c0_0] : memref<16x144xbf16, #tpu.memory_space<vmem>>, vector<16x144xbf16>
    %c0_1 = arith.constant 0 : index
    %c0_2 = arith.constant 0 : index
    %1 = vector.load %arg2[%c0_1, %c0_2] : memref<144x128xbf16, #tpu.memory_space<vmem>>, vector<144x128xbf16>
    %cst = arith.constant dense<0.000000e+00> : vector<16x128xf32>
    %2 = tpu.matmul %0, %1, %cst {dimension_numbers = #tpu.dot_dimension_numbers<[1], [0], [0], [1], [0, 0, 1, 1], [], []>} : vector<16x144xbf16>, vector<144x128xbf16>, vector<16x128xf32> -> vector<16x128xf32>
    %c0_3 = arith.constant 0 : index
    %c0_4 = arith.constant 0 : index
    %3 = vector.load %arg3[%c0_3, %c0_4] : memref<1x128xf32, #tpu.memory_space<vmem>>, vector<1x128xf32>
    %4 = vector.broadcast %3 : vector<1x128xf32> to vector<16x128xf32>
    %5 = arith.addf %2, %4 : vector<16x128xf32>
    %cst_5 = arith.constant 0.000000e+00 : f32
    %6 = vector.broadcast %cst_5 : f32 to vector<16x128xf32>
    %7 = arith.maximumf %5, %6 : vector<16x128xf32>
    %8 = arith.truncf %7 : vector<16x128xf32> to vector<16x128xbf16>
    %c0_6 = arith.constant 0 : index
    %c0_7 = arith.constant 0 : index
    %9 = vector.load %arg4[%c0_6, %c0_7] : memref<16x128xbf16, #tpu.memory_space<vmem>>, vector<16x128xbf16>
    tpu.vector_store %arg4[%c0_6, %c0_7], %8 {strides = array<i32>} : memref<16x128xbf16, #tpu.memory_space<vmem>>, vector<16x128xbf16>,
    return
  }
  func.func @transform_0(%arg0: i32) -> (i32, i32) {
    %c0_i32 = arith.constant 0 : i32
    %c0_i32_0 = arith.constant 0 : i32
    return %arg0, %c0_i32 : i32, i32
  }
  func.func @transform_1(%arg0: i32) -> (i32, i32) {
    %c0_i32 = arith.constant 0 : i32
    %c0_i32_0 = arith.constant 0 : i32
    %c0_i32_1 = arith.constant 0 : i32
    return %c0_i32, %c0_i32_0 : i32, i32
  }
  func.func @transform_2(%arg0: i32) -> (i32, i32) {
    %c0_i32 = arith.constant 0 : i32
    %c0_i32_0 = arith.constant 0 : i32
    %c0_i32_1 = arith.constant 0 : i32
    return %c0_i32, %c0_i32_0 : i32, i32
  }
  func.func @transform_3(%arg0: i32) -> (i32, i32) {
    %c0_i32 = arith.constant 0 : i32
    %c0_i32_0 = arith.constant 0 : i32
    return %arg0, %c0_i32 : i32, i32
  }
}

module attributes {stable_mosaic.version = 11 : i64} {
  func.func @_conv_dense_kernel(%arg0: i32, %arg1: memref<16x576xbf16, #tpu.memory_space<vmem>>, %arg2: memref<576x128xbf16, #tpu.memory_space<vmem>>, %arg3: memref<1x128xf32, #tpu.memory_space<vmem>>, %arg4: memref<16x128xbf16, #tpu.memory_space<vmem>>) attributes {dimension_semantics = [#tpu.dimension_semantics<parallel>], iteration_bounds = array<i64: 1>, scalar_prefetch = 0 : i64, scratch_operands = 0 : i64, tpu.core_type = #tpu.core_type<tc>, window_params = [{transform_indices = @transform_0, window_bounds = array<i64: 16, 576>}, {pipeline_mode = #tpu.pipeline_mode<synchronous>, transform_indices = @transform_1, window_bounds = array<i64: 576, 128>}, {pipeline_mode = #tpu.pipeline_mode<synchronous>, transform_indices = @transform_2, window_bounds = array<i64: 1, 128>}, {transform_indices = @transform_3, window_bounds = array<i64: 16, 128>}]} {
    %c0 = arith.constant 0 : index
    %c0_0 = arith.constant 0 : index
    %0 = vector.load %arg1[%c0, %c0_0] : memref<16x576xbf16, #tpu.memory_space<vmem>>, vector<16x576xbf16>
    %c0_1 = arith.constant 0 : index
    %c0_2 = arith.constant 0 : index
    %1 = vector.load %arg2[%c0_1, %c0_2] : memref<576x128xbf16, #tpu.memory_space<vmem>>, vector<576x128xbf16>
    %cst = arith.constant dense<0.000000e+00> : vector<16x128xf32>
    %2 = tpu.matmul %0, %1, %cst {dimension_numbers = #tpu.dot_dimension_numbers<[1], [0], [0], [1], [0, 0, 1, 1], [], []>} : vector<16x576xbf16>, vector<576x128xbf16>, vector<16x128xf32> -> vector<16x128xf32>
    %c0_3 = arith.constant 0 : index
    %c0_4 = arith.constant 0 : index
    %3 = vector.load %arg3[%c0_3, %c0_4] : memref<1x128xf32, #tpu.memory_space<vmem>>, vector<1x128xf32>
    %4 = vector.broadcast %3 : vector<1x128xf32> to vector<16x128xf32>
    %5 = arith.addf %2, %4 : vector<16x128xf32>
    %cst_5 = arith.constant 0.000000e+00 : f32
    %6 = vector.broadcast %cst_5 : f32 to vector<16x128xf32>
    %7 = arith.maximumf %5, %6 : vector<16x128xf32>
    %8 = arith.truncf %7 : vector<16x128xf32> to vector<16x128xbf16>
    %c0_6 = arith.constant 0 : index
    %c0_7 = arith.constant 0 : index
    %9 = vector.load %arg4[%c0_6, %c0_7] : memref<16x128xbf16, #tpu.memory_space<vmem>>, vector<16x128xbf16>
    tpu.vector_store %arg4[%c0_6, %c0_7], %8 {strides = array<i32>} : memref<16x128xbf16, #tpu.memory_space<vmem>>, vector<16x128xbf16>,
    return
  }
  func.func @transform_0(%arg0: i32) -> (i32, i32) {
    %c0_i32 = arith.constant 0 : i32
    %c0_i32_0 = arith.constant 0 : i32
    return %arg0, %c0_i32 : i32, i32
  }
  func.func @transform_1(%arg0: i32) -> (i32, i32) {
    %c0_i32 = arith.constant 0 : i32
    %c0_i32_0 = arith.constant 0 : i32
    %c0_i32_1 = arith.constant 0 : i32
    return %c0_i32, %c0_i32_0 : i32, i32
  }
  func.func @transform_2(%arg0: i32) -> (i32, i32) {
    %c0_i32 = arith.constant 0 : i32
    %c0_i32_0 = arith.constant 0 : i32
    %c0_i32_1 = arith.constant 0 : i32
    return %c0_i32, %c0_i32_0 : i32, i32
  }
  func.func @transform_3(%arg0: i32) -> (i32, i32) {
    %c0_i32 = arith.constant 0 : i32
    %c0_i32_0 = arith.constant 0 : i32
    return %arg0, %c0_i32 : i32, i32
  }
}

module attributes {stable_mosaic.version = 11 : i64} {
  func.func @_head_kernel(%arg0: i32, %arg1: i32, %arg2: memref<2x1024xbf16, #tpu.memory_space<vmem>>, %arg3: memref<1024x32xbf16, #tpu.memory_space<vmem>>, %arg4: memref<1x32xf32, #tpu.memory_space<vmem>>, %arg5: memref<32x8xf32, #tpu.memory_space<vmem>>, %arg6: memref<1x8xf32, #tpu.memory_space<vmem>>, %arg7: memref<2x8xf32, #tpu.memory_space<vmem>>, %arg8: memref<2x32xf32, #tpu.memory_space<vmem>>) attributes {dimension_semantics = [#tpu.dimension_semantics<parallel>, #tpu.dimension_semantics<arbitrary>], iteration_bounds = array<i64: 1, 1>, scalar_prefetch = 0 : i64, scratch_operands = 1 : i64, tpu.core_type = #tpu.core_type<tc>, window_params = [{transform_indices = @transform_0, window_bounds = array<i64: 2, 1024>}, {transform_indices = @transform_1, window_bounds = array<i64: 1024, 32>}, {pipeline_mode = #tpu.pipeline_mode<synchronous>, transform_indices = @transform_2, window_bounds = array<i64: 1, 32>}, {pipeline_mode = #tpu.pipeline_mode<synchronous>, transform_indices = @transform_3, window_bounds = array<i64: 32, 8>}, {pipeline_mode = #tpu.pipeline_mode<synchronous>, transform_indices = @transform_4, window_bounds = array<i64: 1, 8>}, {transform_indices = @transform_5, window_bounds = array<i64: 2, 8>}]} {
    %c0_i32 = arith.constant 0 : i32
    %0 = arith.cmpi eq, %arg1, %c0_i32 : i32
    %1 = arith.extui %0 : i1 to i32
    %c0_i32_0 = arith.constant 0 : i32
    %2 = arith.cmpi ne, %1, %c0_i32_0 : i32
    scf.if %2 {
      %cst_10 = arith.constant 0.000000e+00 : f32
      %12 = vector.broadcast %cst_10 : f32 to vector<2x32xf32>
      %c0_11 = arith.constant 0 : index
      %c0_12 = arith.constant 0 : index
      %13 = vector.load %arg8[%c0_11, %c0_12] : memref<2x32xf32, #tpu.memory_space<vmem>>, vector<2x32xf32>
      tpu.vector_store %arg8[%c0_11, %c0_12], %12 {strides = array<i32>} : memref<2x32xf32, #tpu.memory_space<vmem>>, vector<2x32xf32>,
    } else {
    }
    %c0 = arith.constant 0 : index
    %c0_1 = arith.constant 0 : index
    %3 = vector.load %arg8[%c0, %c0_1] : memref<2x32xf32, #tpu.memory_space<vmem>>, vector<2x32xf32>
    %c0_2 = arith.constant 0 : index
    %c0_3 = arith.constant 0 : index
    %4 = vector.load %arg2[%c0_2, %c0_3] : memref<2x1024xbf16, #tpu.memory_space<vmem>>, vector<2x1024xbf16>
    %c0_4 = arith.constant 0 : index
    %c0_5 = arith.constant 0 : index
    %5 = vector.load %arg3[%c0_4, %c0_5] : memref<1024x32xbf16, #tpu.memory_space<vmem>>, vector<1024x32xbf16>
    %cst = arith.constant dense<0.000000e+00> : vector<2x32xf32>
    %6 = tpu.matmul %4, %5, %cst {dimension_numbers = #tpu.dot_dimension_numbers<[1], [0], [0], [1], [0, 0, 1, 1], [], []>} : vector<2x1024xbf16>, vector<1024x32xbf16>, vector<2x32xf32> -> vector<2x32xf32>
    %7 = arith.addf %3, %6 : vector<2x32xf32>
    %c0_6 = arith.constant 0 : index
    %c0_7 = arith.constant 0 : index
    %8 = vector.load %arg8[%c0_6, %c0_7] : memref<2x32xf32, #tpu.memory_space<vmem>>, vector<2x32xf32>
    tpu.vector_store %arg8[%c0_6, %c0_7], %7 {strides = array<i32>} : memref<2x32xf32, #tpu.memory_space<vmem>>, vector<2x32xf32>,
    %c0_i32_8 = arith.constant 0 : i32
    %9 = arith.cmpi eq, %arg1, %c0_i32_8 : i32
    %10 = arith.extui %9 : i1 to i32
    %c0_i32_9 = arith.constant 0 : i32
    %11 = arith.cmpi ne, %10, %c0_i32_9 : i32
    scf.if %11 {
      %c0_10 = arith.constant 0 : index
      %c0_11 = arith.constant 0 : index
      %12 = vector.load %arg8[%c0_10, %c0_11] : memref<2x32xf32, #tpu.memory_space<vmem>>, vector<2x32xf32>
      %c0_12 = arith.constant 0 : index
      %c0_13 = arith.constant 0 : index
      %13 = vector.load %arg4[%c0_12, %c0_13] : memref<1x32xf32, #tpu.memory_space<vmem>>, vector<1x32xf32>
      %14 = vector.broadcast %13 : vector<1x32xf32> to vector<2x32xf32>
      %15 = arith.addf %12, %14 : vector<2x32xf32>
      %cst_14 = arith.constant 0.000000e+00 : f32
      %16 = vector.broadcast %cst_14 : f32 to vector<2x32xf32>
      %17 = arith.maximumf %15, %16 : vector<2x32xf32>
      %c0_15 = arith.constant 0 : index
      %c0_16 = arith.constant 0 : index
      %18 = vector.load %arg5[%c0_15, %c0_16] : memref<32x8xf32, #tpu.memory_space<vmem>>, vector<32x8xf32>
      %cst_17 = arith.constant dense<0.000000e+00> : vector<2x8xf32>
      %19 = tpu.matmul %17, %18, %cst_17 {dimension_numbers = #tpu.dot_dimension_numbers<[1], [0], [0], [1], [0, 0, 1, 1], [], []>} : vector<2x32xf32>, vector<32x8xf32>, vector<2x8xf32> -> vector<2x8xf32>
      %c0_18 = arith.constant 0 : index
      %c0_19 = arith.constant 0 : index
      %20 = vector.load %arg6[%c0_18, %c0_19] : memref<1x8xf32, #tpu.memory_space<vmem>>, vector<1x8xf32>
      %21 = vector.broadcast %20 : vector<1x8xf32> to vector<2x8xf32>
      %22 = arith.addf %19, %21 : vector<2x8xf32>
      %cst_20 = arith.constant dense<0xFF800000> : vector<2xf32>
      %23 = vector.multi_reduction <maximumf>, %22, %cst_20 [1] : vector<2x8xf32> to vector<2xf32>
      %24 = vector.shape_cast %23 : vector<2xf32> to vector<2x1xf32>
      %25 = vector.broadcast %24 : vector<2x1xf32> to vector<2x8xf32>
      %26 = arith.subf %22, %25 : vector<2x8xf32>
      %27 = math.exp %26 : vector<2x8xf32>
      %cst_21 = arith.constant dense<0.000000e+00> : vector<2xf32>
      %28 = vector.multi_reduction <add>, %27, %cst_21 [1] : vector<2x8xf32> to vector<2xf32>
      %29 = vector.shape_cast %28 : vector<2xf32> to vector<2x1xf32>
      %30 = vector.broadcast %29 : vector<2x1xf32> to vector<2x8xf32>
      %31 = arith.divf %27, %30 : vector<2x8xf32>
      %c0_22 = arith.constant 0 : index
      %c0_23 = arith.constant 0 : index
      %32 = vector.load %arg7[%c0_22, %c0_23] : memref<2x8xf32, #tpu.memory_space<vmem>>, vector<2x8xf32>
      tpu.vector_store %arg7[%c0_22, %c0_23], %31 {strides = array<i32>} : memref<2x8xf32, #tpu.memory_space<vmem>>, vector<2x8xf32>,
    } else {
    }
    return
  }
  func.func @transform_0(%arg0: i32, %arg1: i32) -> (i32, i32) {
    %c0_i32 = arith.constant 0 : i32
    return %arg0, %arg1 : i32, i32
  }
  func.func @transform_1(%arg0: i32, %arg1: i32) -> (i32, i32) {
    %c0_i32 = arith.constant 0 : i32
    %c0_i32_0 = arith.constant 0 : i32
    return %arg1, %c0_i32 : i32, i32
  }
  func.func @transform_2(%arg0: i32, %arg1: i32) -> (i32, i32) {
    %c0_i32 = arith.constant 0 : i32
    %c0_i32_0 = arith.constant 0 : i32
    %c0_i32_1 = arith.constant 0 : i32
    return %c0_i32, %c0_i32_0 : i32, i32
  }
  func.func @transform_3(%arg0: i32, %arg1: i32) -> (i32, i32) {
    %c0_i32 = arith.constant 0 : i32
    %c0_i32_0 = arith.constant 0 : i32
    %c0_i32_1 = arith.constant 0 : i32
    return %c0_i32, %c0_i32_0 : i32, i32
  }
  func.func @transform_4(%arg0: i32, %arg1: i32) -> (i32, i32) {
    %c0_i32 = arith.constant 0 : i32
    %c0_i32_0 = arith.constant 0 : i32
    %c0_i32_1 = arith.constant 0 : i32
    return %c0_i32, %c0_i32_0 : i32, i32
  }
  func.func @transform_5(%arg0: i32, %arg1: i32) -> (i32, i32) {
    %c0_i32 = arith.constant 0 : i32
    %c0_i32_0 = arith.constant 0 : i32
    return %arg0, %c0_i32 : i32, i32
  }
}

</mosaic_0001>

<llo_original>
// kernel: tile.13
$region0: #{tile.13}
  #allocation0 [shape = 's32[1]{0}', space=sflag, size = 0x4, scoped, tag = 'scoped memory for tile.13']
  %s0 = inlined_call_operand.vmem [shape: f32[32], index: 0, kind: input, shape index: {}]
  %s1 = inlined_call_operand.vmem [shape: f32[4,32], index: 1, kind: output, shape index: {}]
  // Predicated region
  $region2: #{tile.13} parent=0 // pred_check
    _
  $region3: #{tile.13} parent=0 // pred_check_branch
    %3 = sbr.rel (0) target = $region5
  $region4: #{tile.13} parent=0 // pred_region
    _
  $region5: #{tile.13} parent=0 // pred_fallthru
    _
  %v4 = vld [vmem:[%s0] ss:$0 sm:$0xff]
  %5 = vst [vmem:[%s1] sm:$0xf] %v4

// kernel: tile.14
$region0: #{tile.14}
  %s0 = inlined_call_operand.vmem [shape: f32[4,32], index: 0, kind: input, shape index: {}]
  %s1 = inlined_call_operand.vmem [shape: f32[1,128], index: 1, kind: output, shape index: {}]
  $region1: #{tile.14} parent=0
    #allocation0 [shape = 'u8[4096]{0}', space=vmem, size = 0x1000, scoped, tag = 'scoped mem for output reshape']
    #allocation1 [shape = 'u8[4096]{0}', space=vmem, size = 0x1000, scoped, tag = 'scoped mem for input reshape']
    %s3 = sshll.u32 1, 4
    %s4 = ssub.s32 %s3, 1
    %v5 = vld [vmem:[%s0] sm:%s4]
    %6 = vst [vmem:[#allocation1] sm:%s4] %v5
    %v7 = vld [vmem:[#allocation1] sm:$0x1]
    %vm8 = vcmask 261120
    %9 = vst.msk [vmem:[#allocation0] sm:$0x1] %vm8, %v7
    %s10 = scalar_lea.vmem [#allocation1], 3
    %v11 = vld [vmem:[%s10] sm:$0x1]
    %12 = vrot.lane.b32.xlu0 %v11, 96
    %v13 = vpop.permute.xlu0 %12
    %vm14 = vcmask 1048320
    %15 = vst.msk [vmem:[#allocation0] sm:$0x1] %vm14, %v13
    %s16 = scalar_lea.vmem [#allocation1], 2
    %v17 = vld [vmem:[%s16] sm:$0x1]
    %18 = vrot.lane.b32.xlu0 %v17, 64
    %v19 = vpop.permute.xlu0 %18
    %vm20 = vcmask 785920
    %21 = vst.msk [vmem:[#allocation0] sm:$0x1] %vm20, %v19
    %s22 = scalar_lea.vmem [#allocation1], 1
    %v23 = vld [vmem:[%s22] sm:$0x1]
    %24 = vrot.lane.b32.xlu0 %v23, 32
    %v25 = vpop.permute.xlu0 %24
    %vm26 = vcmask 523520
    %27 = vst.msk [vmem:[#allocation0] sm:$0x1] %vm26, %v25
    %s29 = sshll.u32 1, 1
    %s30 = ssub.s32 %s29, 1
    %v32 = vld [vmem:[#allocation0] sm:%s30]
    %s33 = sshll.u32 1, 1
    %s34 = ssub.s32 %s33, 1
    %35 = vst [vmem:[%s1] sm:%s34] %v32

// kernel: classifier_forward.3
$region0: #{classifier_forward.3}
  #allocation0 [shape = 'u32[]', space=smem, size = 0x4, offset = 0x4, fixed_abs, tag = 'smem constant byte address 0x4 - core index']
  #allocation1 [shape = 'u32[144,128]{1,0:T(1,128)}', space=vmem, size = 0x12000, scoped, tag = 'internal scratch']
  %s0 = inlined_call_operand.vmem [shape: bf16[32,144], index: 0, kind: input, shape index: {}]
  %s1 = inlined_call_operand.vmem [shape: bf16[144,128], index: 1, kind: input, shape index: {}]
  %s2 = inlined_call_operand.vmem [shape: f32[1,128], index: 2, kind: input, shape index: {}]
  %s3 = inlined_call_operand.vmem [shape: bf16[32,128], index: 3, kind: output, shape index: {}]
  %s4 = sld [smem:[#allocation0]]
  $region45: #{classifier_forward.3} parent=0
    _
  %s6 = ssub.s32 1, %s4
  %s7 = scalar_select 0, %s6, %s4
  loop: start=0, step=1, limit=4
  $region2: #{classifier_forward.3} parent=0 // loop_pre_header
    _
  $region3: #{classifier_forward.3} parent=0 // loop_header
    %s9 = sphi 0, %s13
    %p10 = scmp.ge.s32.totalorder %s9, 4
    %s19 = sphi 0, %s21
    %s22 = sphi 0, %s19
    %s23 = sphi 0, %s22
    %s39 = sphi 0, %s23
    %s43 = sphi 0, %s43
    %s45 = sphi 0, %s43
    %s46 = sphi 0, %s45
    %s60 = sphi 0, %s46
    %s64 = sphi 0, %s64
    %s66 = sphi 0, %s64
    %s67 = sphi 0, %s66
    %s81 = sphi 0, %s67
    %s87 = sphi 0, %s89
    %s90 = sphi 0, %s87
    %s91 = sphi 0, %s90
    %s107 = sphi 0, %s91
  $region4: #{classifier_forward.3} parent=0 // loop_header_branch
    %12 = sbr.rel (%p10) target = $region8
  $region5: #{classifier_forward.3} parent=0 // loop_body
    %s14 = ssub.s32 %s9, 1
    %s15 = ssub.s32 %s9, 2
    %s16 = sadd.s32 %s9, 1
    %s17 = ssub.s32 %s9, %s16
    %p18 = scmp.eq.s32.totalorder %s17, 0
    %s20 = sadd.s32 %s19, 1
    %s21 = scalar_select %p18, %s19, %s20
    %p24 = pneg %p18
    %p25 = scmp.eq.s32.totalorder %s9, 1
    %p26 = por %p24, %p25
    %p27 = scmp.ne.s32.totalorder %s19, %s22
    %p28 = scmp.eq.s32.totalorder %s9, 0
    %p29 = por %p27, %p28
    %p30 = scmp.ne.s32.totalorder %s19, %s22
    %p31 = scmp.eq.s32.totalorder %s14, 1
    %p32 = por %p30, %p31
    %p33 = scmp.ne.s32.totalorder %s22, %s23
    %p34 = scmp.eq.s32.totalorder %s14, 0
    %p35 = por %p33, %p34
    %p36 = scmp.ne.s32.totalorder %s22, %s23
    %p37 = scmp.eq.s32.totalorder %s15, 1
    %p38 = por %p36, %p37
    %p40 = scmp.ne.s32.totalorder %s23, %s39
    %p41 = scmp.eq.s32.totalorder %s15, 0
    %p42 = por %p40, %p41
    %s44 = sadd.s32 %s43, 1
    %p47 = scmp.eq.s32.totalorder %s9, 1
    %p48 = scmp.ne.s32.totalorder %s43, %s45
    %p49 = scmp.eq.s32.totalorder %s9, 0
    %p50 = por %p48, %p49
    %p51 = scmp.ne.s32.totalorder %s43, %s45
    %p52 = scmp.eq.s32.totalorder %s14, 1
    %p53 = por %p51, %p52
    %p54 = scmp.ne.s32.totalorder %s45, %s46
    %p55 = scmp.eq.s32.totalorder %s14, 0
    %p56 = por %p54, %p55
    %p57 = scmp.ne.s32.totalorder %s45, %s46
    %p58 = scmp.eq.s32.totalorder %s15, 1
    %p59 = por %p57, %p58
    %p61 = scmp.ne.s32.totalorder %s46, %s60
    %p62 = scmp.eq.s32.totalorder %s15, 0
    %p63 = por %p61, %p62
    %s65 = sadd.s32 %s64, 1
    %p68 = scmp.eq.s32.totalorder %s9, 1
    %p69 = scmp.ne.s32.totalorder %s64, %s66
    %p70 = scmp.eq.s32.totalorder %s9, 0
    %p71 = por %p69, %p70
    %p72 = scmp.ne.s32.totalorder %s64, %s66
    %p73 = scmp.eq.s32.totalorder %s14, 1
    %p74 = por %p72, %p73
    %p75 = scmp.ne.s32.totalorder %s66, %s67
    %p76 = scmp.eq.s32.totalorder %s14, 0
    %p77 = por %p75, %p76
    %p78 = scmp.ne.s32.totalorder %s66, %s67
    %p79 = scmp.eq.s32.totalorder %s15, 1
    %p80 = por %p78, %p79
    %p82 = scmp.ne.s32.totalorder %s67, %s81
    %p83 = scmp.eq.s32.totalorder %s15, 0
    %p84 = por %p82, %p83
    %s85 = ssub.s32 %s9, %s16
    %p86 = scmp.eq.s32.totalorder %s85, 0
    %s88 = sadd.s32 %s87, 1
    %s89 = scalar_select %p86, %s87, %s88
    %p92 = pneg %p86
    %p93 = scmp.eq.s32.totalorder %s9, 1
    %p94 = por %p92, %p93
    %p95 = scmp.ne.s32.totalorder %s87, %s90
    %p96 = scmp.eq.s32.totalorder %s9, 0
    %p97 = por %p95, %p96
    %p98 = scmp.ne.s32.totalorder %s87, %s90
    %p99 = scmp.eq.s32.totalorder %s14, 1
    %p100 = por %p98, %p99
    %p101 = scmp.ne.s32.totalorder %s90, %s91
    %p102 = scmp.eq.s32.totalorder %s14, 0
    %p103 = por %p101, %p102
    %p104 = scmp.ne.s32.totalorder %s90, %s91
    %p105 = scmp.eq.s32.totalorder %s15, 1
    %p106 = por %p104, %p105
    %p108 = scmp.ne.s32.totalorder %s91, %s107
    %p109 = scmp.eq.s32.totalorder %s15, 0
    %p110 = por %p108, %p109
    %p111 = scmp.le.s32.totalorder 1, %s9
    %p112 = scmp.lt.s32.totalorder %s9, 3
    %p113 = pnand %p111, %p112
    %p114 = pneg %p113
    // Predicated region
    $region9: #{classifier_forward.3} parent=5 // pred_check
      _
    $region10: #{classifier_forward.3} parent=5 // pred_check_branch
      %116 = sbr.rel (%p113) target = $region12
    $region11: #{classifier_forward.3} parent=5 // pred_region
      %s117 = ssub.s32 %s9, 1
      // Predicated region
      $region13: #{classifier_forward.3} parent=11 // pred_check
        %p118 = pneg %p56
      $region14: #{classifier_forward.3} parent=11 // pred_check_branch
        %120 = sbr.rel (%p118) target = $region16
      $region15: #{classifier_forward.3} parent=11 // pred_region
        _
      $region16: #{classifier_forward.3} parent=11 // pred_fallthru
        _
      // Predicated region
      $region17: #{classifier_forward.3} parent=11 // pred_check
        %p121 = pneg %p77
      $region18: #{classifier_forward.3} parent=11 // pred_check_branch
        %123 = sbr.rel (%p121) target = $region20
      $region19: #{classifier_forward.3} parent=11 // pred_region
        _
      $region20: #{classifier_forward.3} parent=11 // pred_fallthru
        _
    $region12: #{classifier_forward.3} parent=5 // pred_fallthru
      _
    %p124 = scmp.lt.s32.totalorder %s9, 2
    // Predicated region
    $region21: #{classifier_forward.3} parent=5 // pred_check
      %p125 = pneg %p124
    $region22: #{classifier_forward.3} parent=5 // pred_check_branch
      %127 = sbr.rel (%p125) target = $region24
    $region23: #{classifier_forward.3} parent=5 // pred_region
      // Predicated region
      $region25: #{classifier_forward.3} parent=23 // pred_check
        %p128 = pneg %p29
      $region26: #{classifier_forward.3} parent=23 // pred_check_branch
        %130 = sbr.rel (%p128) target = $region28
      $region27: #{classifier_forward.3} parent=23 // pred_region
        %s131 = smul.u32 2, %s9
        %p132 = scmp.lt.s32.totalorder %s131, 3
        %s133 = scalar_select %p132, %s131, 3
        %s134 = smul.addr %s133, 2
        %s135 = smul.addr %s134, 4
        %s136 = scalar_lea.vmem %s0, %s135
        %s137 = smul.u32 2, %s9
      $region28: #{classifier_forward.3} parent=23 // pred_fallthru
        _
    $region24: #{classifier_forward.3} parent=5 // pred_fallthru
      _
    %p138 = scmp.le.s32.totalorder 1, %s9
    %p139 = scmp.lt.s32.totalorder %s9, 3
    %p140 = pnand %p138, %p139
    %p141 = pneg %p140
    // Predicated region
    $region29: #{classifier_forward.3} parent=5 // pred_check
      _
    $region30: #{classifier_forward.3} parent=5 // pred_check_branch
      %143 = sbr.rel (%p140) target = $region32
    $region31: #{classifier_forward.3} parent=5 // pred_region
      %s144 = ssub.s32 %s9, 1
      %s145 = smul.u32 2, %s14
      %p146 = scmp.lt.s32.totalorder %s145, 3
      %s147 = scalar_select %p146, %s145, 3
      %s148 = smul.addr %s147, 2
      %s149 = smul.addr %s148, 4
      %s150 = scalar_lea.vmem %s0, %s149
      %p151 = pneg %p35
      %p152 = pneg %p32
      %p153 = pneg %p56
      %p154 = pneg %p53
      %p155 = pneg %p77
      %p156 = pneg %p74
      %p157 = pneg %p103
      %p158 = pneg %p100
      %s159 = smul.u32 2, %s14
      %p160 = scmp.lt.s32.totalorder %s159, 3
      %s161 = scalar_select %p160, %s159, 3
      %s162 = smul.addr %s161, 4
      %s163 = scalar_lea.vmem %s3, %s162
      %s164 = smul.u32 2, %s14
      %p165 = scmp.lt.s32.totalorder %s164, 3
      %s166 = scalar_select %p165, %s164, 3
      %s167 = smul.addr %s166, 2
      %s168 = smul.addr %s167, 4
      %s169 = scalar_lea.vmem %s0, %s168
      %s170 = smul.u32 2, %s14
      %s171 = smul.u32 2, %s14
      %p172 = scmp.lt.s32.totalorder %s171, 3
      %s173 = scalar_select %p172, %s171, 3
      %s174 = smul.addr %s173, 4
      %s175 = scalar_lea.vmem %s3, %s174
      %s176 = smul.u32 2, %s14
      %v178 = vld [vmem:[%s169] sm:$0xff]
      %v179 = vld [vmem:[%s169 + $0x8] sm:$0xff]
      %v180 = vld [vmem:[%s1] sm:$0xf]
      %v181 = vld [vmem:[%s1 + $0x4] sm:$0xf]
      %v182 = vld [vmem:[%s1 + $0x8] sm:$0xf]
      %v183 = vld [vmem:[%s1 + $0xc] sm:$0xf]
      %v184 = vld [vmem:[%s1 + $0x10] sm:$0xf]
      %v185 = vld [vmem:[%s1 + $0x14] sm:$0xf]
      %v186 = vld [vmem:[%s1 + $0x18] sm:$0xf]
      %v187 = vld [vmem:[%s1 + $0x1c] sm:$0xf]
      %v188 = vld [vmem:[%s1 + $0x20] sm:$0xf]
      %v189 = vld [vmem:[%s1 + $0x24] sm:$0xf]
      %v190 = vld [vmem:[%s1 + $0x28] sm:$0xf]
      %v191 = vld [vmem:[%s1 + $0x2c] sm:$0xf]
      %v192 = vld [vmem:[%s1 + $0x30] sm:$0xf]
      %v193 = vld [vmem:[%s1 + $0x34] sm:$0xf]
      %v194 = vld [vmem:[%s1 + $0x38] sm:$0xf]
      %v195 = vld [vmem:[%s1 + $0x3c] sm:$0xf]
      %v196 = vld [vmem:[%s1 + $0x40] sm:$0xf]
      %v197 = vld [vmem:[%s1 + $0x44] sm:$0xf]
      %v198 = vld [vmem:[%s2] sm:$0x1]
      %v200 = vlaneseq
      %v201 = vshrl.u32 %v200, 7
      %v202 = vsub.s32 0, %v201
      %v203 = vrot.slane %v198, %v202
      %v207 = vunpack.c.l.b16 %v178
      %v208 = vunpack.c.h.b16 %v178
      %v209 = vunpack.c.l.b16 %v179
      %v210 = vunpack.c.h.b16 %v179
      %v211 = vpack.c.b16 %v209, %v207
      %v212 = vpack.c.b16 %v210, %v208
      %v232 = vunpack.c.l.b16 %v180
      %v233 = vunpack.c.l.b16 %v181
      %v234 = vunpack.c.l.b16 %v182
      %v235 = vunpack.c.l.b16 %v183
      %v236 = vunpack.c.l.b16 %v184
      %v237 = vunpack.c.l.b16 %v185
      %v238 = vunpack.c.l.b16 %v186
      %v239 = vunpack.c.l.b16 %v187
      %v240 = vunpack.c.l.b16 %v188
      %v241 = vunpack.c.l.b16 %v189
      %v242 = vunpack.c.l.b16 %v190
      %v243 = vunpack.c.l.b16 %v191
      %v244 = vunpack.c.l.b16 %v192
      %v245 = vunpack.c.l.b16 %v193
      %v246 = vunpack.c.l.b16 %v194
      %v247 = vunpack.c.l.b16 %v195
      %v248 = vunpack.c.l.b16 %v196
      %v249 = vunpack.c.l.b16 %v197
      %v250 = vpack.c.b16 %v233, %v232
      %v251 = vpack.c.b16 %v235, %v234
      %v252 = vpack.c.b16 %v237, %v236
      %v253 = vpack.c.b16 %v239, %v238
      %v254 = vpack.c.b16 %v241, %v240
      %v255 = vpack.c.b16 %v243, %v242
      %v256 = vpack.c.b16 %v245, %v244
      %v257 = vpack.c.b16 %v247, %v246
      %v258 = vpack.c.b16 %v249, %v248
      %vm268 = vcmask 130048
      %v270 = vsel %vm268, %v212, 0
      %272 = vmatprep.subr.bf16.mxu0 0
      %273 = vmatpush1.bf16.msra.mxu0 %v257
      %274 = vmatprep.subr.bf16.mxu0 0
      %275 = vmatpush1.bf16.msra.mxu0 %v256
      %276 = vmatprep.subr.bf16.mxu0 0
      %277 = vmatpush1.bf16.msra.mxu0 %v255
      %278 = vmatprep.subr.bf16.mxu0 0
      %279 = vmatpush1.bf16.msra.mxu0 %v254
      %280 = vmatprep.subr.bf16.mxu0 0
      %281 = vmatpush1.bf16.msra.mxu0 %v253
      %282 = vmatprep.subr.bf16.mxu0 0
      %283 = vmatpush1.bf16.msra.mxu0 %v252
      %284 = vmatprep.subr.bf16.mxu0 0
      %285 = vmatpush1.bf16.msra.mxu0 %v251
      %286 = vmatprep.subr.bf16.mxu0 0
      %287 = vmatpush1.bf16.msra.mxu0 %v250
      %288 = vmatprep.subr.bf16.mxu0 0
      %289 = vmatpush2.bf16.msra.mxu0 0
      %290 = vmatprep.subr.bf16.mxu0 0
      %291 = vmatpush2.bf16.msra.mxu0 0
      %292 = vmatprep.subr.bf16.mxu0 0
      %293 = vmatpush2.bf16.msra.mxu0 0
      %294 = vmatprep.subr.bf16.mxu0 0
      %295 = vmatpush2.bf16.msra.mxu0 0
      %296 = vmatprep.subr.bf16.mxu0 0
      %297 = vmatpush2.bf16.msra.mxu0 0
      %298 = vmatprep.subr.bf16.mxu0 0
      %299 = vmatpush2.bf16.msra.mxu0 0
      %300 = vmatprep.subr.bf16.mxu0 0
      %301 = vmatpush2.bf16.msra.mxu0 0
      %302 = vmatprep.subr.bf16.mxu0 0
      %303 = vmatpush2.bf16.msra.mxu0 %v258
      %304 = vmatprep.mubr.bf16.mxu0 %v270
      %305 = vmatmul.mubr.bf16.gmra.mxu0 %v211
      %v306 = vpop.f32.mrf.mxu0
      %v307 = vadd.f32 %v203, %v306
      %v308 = vpop.f32.mrf.mxu0
      %v309 = vpop.f32.mrf.mxu0
      %v310 = vadd.f32 %v203, %v309
      %v311 = vpop.f32.mrf.mxu0
      %312 = vdwg.mxu0
      %v313 = vmax.f32 %v307, 0.0
      %v314 = vmax.f32 %v310, 0.0
      %v315 = vpack.c.bf16 %v314, %v313
      %v317 = vunpack.c.l.b16 %v315
      %v318 = vunpack.c.h.b16 %v315
      %v319 = vpack.c.b16 %v317, %v317
      %v320 = vpack.c.b16 %v318, %v318
      %323 = vst [vmem:[%s175] sm:$0xf] %v319
      %324 = vst [vmem:[%s175 + $0x4] sm:$0xf] %v320
      %s325 = smul.u32 2, %s14
      %p326 = scmp.lt.s32.totalorder %s325, 3
      %s327 = scalar_select %p326, %s325, 3
      %s328 = smul.addr %s327, 4
      %s329 = scalar_lea.vmem %s3, %s328
      // Predicated region
      $region33: #{classifier_forward.3} parent=31 // pred_check
        %p330 = pneg %p100
      $region34: #{classifier_forward.3} parent=31 // pred_check_branch
        %332 = sbr.rel (%p330) target = $region36
      $region35: #{classifier_forward.3} parent=31 // pred_region
        %s333 = smul.u32 2, %s14
      $region36: #{classifier_forward.3} parent=31 // pred_fallthru
        _
    $region32: #{classifier_forward.3} parent=5 // pred_fallthru
      _
    %p334 = scmp.le.s32.totalorder 2, %s9
    // Predicated region
    $region37: #{classifier_forward.3} parent=5 // pred_check
      %p335 = pneg %p334
    $region38: #{classifier_forward.3} parent=5 // pred_check_branch
      %337 = sbr.rel (%p335) target = $region40
    $region39: #{classifier_forward.3} parent=5 // pred_region
      %s338 = ssub.s32 %s9, 2
      // Predicated region
      $region41: #{classifier_forward.3} parent=39 // pred_check
        %p339 = pneg %p106
      $region42: #{classifier_forward.3} parent=39 // pred_check_branch
        %341 = sbr.rel (%p339) target = $region44
      $region43: #{classifier_forward.3} parent=39 // pred_region
        %s342 = smul.u32 2, %s15
        %p343 = scmp.lt.s32.totalorder %s342, 3
        %s344 = scalar_select %p343, %s342, 3
        %s345 = smul.addr %s344, 4
        %s346 = scalar_lea.vmem %s3, %s345
      $region44: #{classifier_forward.3} parent=39 // pred_fallthru
        _
    $region40: #{classifier_forward.3} parent=5 // pred_fallthru
      _
  $region6: #{classifier_forward.3} parent=0 // loop_footer
    %s13 = sadd.s32 1, %s9
  $region7: #{classifier_forward.3} parent=0 // loop_footer_branch
    %8 = sbr.rel target = $region3
  $region8: #{classifier_forward.3} parent=0 // loop_exit
    _

// kernel: tile.18
$region0: #{tile.18}
  #allocation0 [shape = 's32[1]{0}', space=sflag, size = 0x4, scoped, tag = 'scoped memory for tile.18']
  %s0 = inlined_call_operand.vmem [shape: f32[64], index: 0, kind: input, shape index: {}]
  %s1 = inlined_call_operand.vmem [shape: f32[2,64], index: 1, kind: output, shape index: {}]
  // Predicated region
  $region2: #{tile.18} parent=0 // pred_check
    _
  $region3: #{tile.18} parent=0 // pred_check_branch
    %3 = sbr.rel (0) target = $region5
  $region4: #{tile.18} parent=0 // pred_region
    _
  $region5: #{tile.18} parent=0 // pred_fallthru
    _
  %v4 = vld [vmem:[%s0] ss:$0 sm:$0xff]
  %5 = vst [vmem:[%s1] sm:$0x3] %v4

// kernel: tile.19
$region0: #{tile.19}
  %s0 = inlined_call_operand.vmem [shape: f32[2,64], index: 0, kind: input, shape index: {}]
  %s1 = inlined_call_operand.vmem [shape: f32[1,128], index: 1, kind: output, shape index: {}]
  $region1: #{tile.19} parent=0
    #allocation0 [shape = 'u8[4096]{0}', space=vmem, size = 0x1000, scoped, tag = 'scoped mem for output reshape']
    #allocation1 [shape = 'u8[4096]{0}', space=vmem, size = 0x1000, scoped, tag = 'scoped mem for input reshape']
    %s3 = sshll.u32 1, 2
    %s4 = ssub.s32 %s3, 1
    %v5 = vld [vmem:[%s0] sm:%s4]
    %6 = vst [vmem:[#allocation1] sm:%s4] %v5
    %v7 = vld [vmem:[#allocation1] sm:$0x1]
    %vm8 = vcmask 523264
    %9 = vst.msk [vmem:[#allocation0] sm:$0x1] %vm8, %v7
    %s10 = scalar_lea.vmem [#allocation1], 1
    %v11 = vld [vmem:[%s10] sm:$0x1]
    %12 = vrot.lane.b32.xlu0 %v11, 64
    %v13 = vpop.permute.xlu0 %12
    %vm14 = vcmask 1048064
    %15 = vst.msk [vmem:[#allocation0] sm:$0x1] %vm14, %v13
    %s17 = sshll.u32 1, 1
    %s18 = ssub.s32 %s17, 1
    %v20 = vld [vmem:[#allocation0] sm:%s18]
    %s21 = sshll.u32 1, 1
    %s22 = ssub.s32 %s21, 1
    %23 = vst [vmem:[%s1] sm:%s22] %v20

// kernel: classifier_forward.4
$region0: #{classifier_forward.4}
  #allocation0 [shape = 'u32[]', space=smem, size = 0x4, offset = 0x4, fixed_abs, tag = 'smem constant byte address 0x4 - core index']
  #allocation1 [shape = 'u32[144,128]{1,0:T(1,128)}', space=vmem, size = 0x12000, scoped, tag = 'internal scratch']
  %s0 = inlined_call_operand.vmem [shape: bf16[16,576], index: 0, kind: input, shape index: {}]
  %s1 = inlined_call_operand.vmem [shape: bf16[576,128], index: 1, kind: input, shape index: {}]
  %s2 = inlined_call_operand.vmem [shape: f32[1,128], index: 2, kind: input, shape index: {}]
  %s3 = inlined_call_operand.vmem [shape: bf16[16,128], index: 3, kind: output, shape index: {}]
  %s4 = sld [smem:[#allocation0]]
  $region22: #{classifier_forward.4} parent=0
    _
  %s6 = ssub.s32 1, %s4
  %s7 = scalar_select 0, %s6, %s4
  // Predicated region
  $region2: #{classifier_forward.4} parent=0 // pred_check
    _
  $region3: #{classifier_forward.4} parent=0 // pred_check_branch
    %9 = sbr.rel (0) target = $region5
  $region4: #{classifier_forward.4} parent=0 // pred_region
    _
  $region5: #{classifier_forward.4} parent=0 // pred_fallthru
    _
  // Predicated region
  $region6: #{classifier_forward.4} parent=0 // pred_check
    _
  $region7: #{classifier_forward.4} parent=0 // pred_check_branch
    %11 = sbr.rel (0) target = $region9
  $region8: #{classifier_forward.4} parent=0 // pred_region
    _
  $region9: #{classifier_forward.4} parent=0 // pred_fallthru
    _
  // Predicated region
  $region10: #{classifier_forward.4} parent=0 // pred_check
    _
  $region11: #{classifier_forward.4} parent=0 // pred_check_branch
    %13 = sbr.rel (0) target = $region13
  $region12: #{classifier_forward.4} parent=0 // pred_region
    _
  $region13: #{classifier_forward.4} parent=0 // pred_fallthru
    _
  %v15 = vld [vmem:[%s0] sm:$0xff]
  %v16 = vld [vmem:[%s0 + $0x8] sm:$0xff]
  %v17 = vld [vmem:[%s0 + $0x10] sm:$0xf]
  %v18 = vld [vmem:[%s0 + $0x14] sm:$0xff]
  %v19 = vld [vmem:[%s0 + $0x1c] sm:$0xff]
  %v20 = vld [vmem:[%s0 + $0x24] sm:$0xf]
  %v21 = vld [vmem:[%s1] sm:$0xf]
  %v22 = vld [vmem:[%s1 + $0x4] sm:$0xf]
  %v23 = vld [vmem:[%s1 + $0x8] sm:$0xf]
  %v24 = vld [vmem:[%s1 + $0xc] sm:$0xf]
  %v25 = vld [vmem:[%s1 + $0x10] sm:$0xf]
  %v26 = vld [vmem:[%s1 + $0x14] sm:$0xf]
  %v27 = vld [vmem:[%s1 + $0x18] sm:$0xf]
  %v28 = vld [vmem:[%s1 + $0x1c] sm:$0xf]
  %v29 = vld [vmem:[%s1 + $0x20] sm:$0xf]
  %v30 = vld [vmem:[%s1 + $0x24] sm:$0xf]
  %v31 = vld [vmem:[%s1 + $0x28] sm:$0xf]
  %v32 = vld [vmem:[%s1 + $0x2c] sm:$0xf]
  %v33 = vld [vmem:[%s1 + $0x30] sm:$0xf]
  %v34 = vld [vmem:[%s1 + $0x34] sm:$0xf]
  %v35 = vld [vmem:[%s1 + $0x38] sm:$0xf]
  %v36 = vld [vmem:[%s1 + $0x3c] sm:$0xf]
  %v37 = vld [vmem:[%s1 + $0x40] sm:$0xf]
  %v38 = vld [vmem:[%s1 + $0x44] sm:$0xf]
  %v39 = vld [vmem:[%s1 + $0x48] sm:$0xf]
  %v40 = vld [vmem:[%s1 + $0x4c] sm:$0xf]
  %v41 = vld [vmem:[%s1 + $0x50] sm:$0xf]
  %v42 = vld [vmem:[%s1 + $0x54] sm:$0xf]
  %v43 = vld [vmem:[%s1 + $0x58] sm:$0xf]
  %v44 = vld [vmem:[%s1 + $0x5c] sm:$0xf]
  %v45 = vld [vmem:[%s1 + $0x60] sm:$0xf]
  %v46 = vld [vmem:[%s1 + $0x64] sm:$0xf]
  %v47 = vld [vmem:[%s1 + $0x68] sm:$0xf]
  %v48 = vld [vmem:[%s1 + $0x6c] sm:$0xf]
  %v49 = vld [vmem:[%s1 + $0x70] sm:$0xf]
  %v50 = vld [vmem:[%s1 + $0x74] sm:$0xf]
  %v51 = vld [vmem:[%s1 + $0x78] sm:$0xf]
  %v52 = vld [vmem:[%s1 + $0x7c] sm:$0xf]
  %v53 = vld [vmem:[%s1 + $0x80] sm:$0xf]
  %v54 = vld [vmem:[%s1 + $0x84] sm:$0xf]
  %v55 = vld [vmem:[%s1 + $0x88] sm:$0xf]
  %v56 = vld [vmem:[%s1 + $0x8c] sm:$0xf]
  %v57 = vld [vmem:[%s1 + $0x90] sm:$0xf]
  %v58 = vld [vmem:[%s1 + $0x94] sm:$0xf]
  %v59 = vld [vmem:[%s1 + $0x98] sm:$0xf]
  %v60 = vld [vmem:[%s1 + $0x9c] sm:$0xf]
  %v61 = vld [vmem:[%s1 + $0xa0] sm:$0xf]
  %v62 = vld [vmem:[%s1 + $0xa4] sm:$0xf]
  %v63 = vld [vmem:[%s1 + $0xa8] sm:$0xf]
  %v64 = vld [vmem:[%s1 + $0xac] sm:$0xf]
  %v65 = vld [vmem:[%s1 + $0xb0] sm:$0xf]
  %v66 = vld [vmem:[%s1 + $0xb4] sm:$0xf]
  %v67 = vld [vmem:[%s1 + $0xb8] sm:$0xf]
  %v68 = vld [vmem:[%s1 + $0xbc] sm:$0xf]
  %v69 = vld [vmem:[%s1 + $0xc0] sm:$0xf]
  %v70 = vld [vmem:[%s1 + $0xc4] sm:$0xf]
  %v71 = vld [vmem:[%s1 + $0xc8] sm:$0xf]
  %v72 = vld [vmem:[%s1 + $0xcc] sm:$0xf]
  %v73 = vld [vmem:[%s1 + $0xd0] sm:$0xf]
  %v74 = vld [vmem:[%s1 + $0xd4] sm:$0xf]
  %v75 = vld [vmem:[%s1 + $0xd8] sm:$0xf]
  %v76 = vld [vmem:[%s1 + $0xdc] sm:$0xf]
  %v77 = vld [vmem:[%s1 + $0xe0] sm:$0xf]
  %v78 = vld [vmem:[%s1 + $0xe4] sm:$0xf]
  %v79 = vld [vmem:[%s1 + $0xe8] sm:$0xf]
  %v80 = vld [vmem:[%s1 + $0xec] sm:$0xf]
  %v81 = vld [vmem:[%s1 + $0xf0] sm:$0xf]
  %v82 = vld [vmem:[%s1 + $0xf4] sm:$0xf]
  %v83 = vld [vmem:[%s1 + $0xf8] sm:$0xf]
  %v84 = vld [vmem:[%s1 + $0xfc] sm:$0xf]
  %v85 = vld [vmem:[%s1 + $0x100] sm:$0xf]
  %v86 = vld [vmem:[%s1 + $0x104] sm:$0xf]
  %v87 = vld [vmem:[%s1 + $0x108] sm:$0xf]
  %v88 = vld [vmem:[%s1 + $0x10c] sm:$0xf]
  %v89 = vld [vmem:[%s1 + $0x110] sm:$0xf]
  %v90 = vld [vmem:[%s1 + $0x114] sm:$0xf]
  %v91 = vld [vmem:[%s1 + $0x118] sm:$0xf]
  %v92 = vld [vmem:[%s1 + $0x11c] sm:$0xf]
  %v93 = vld [vmem:[%s2] sm:$0x1]
  %v95 = vlaneseq
  %v96 = vshrl.u32 %v95, 7
  %v97 = vsub.s32 0, %v96
  %v98 = vrot.slane %v93, %v97
  %v106 = vunpack.c.l.b16 %v15
  %v107 = vunpack.c.h.b16 %v15
  %v108 = vunpack.c.l.b16 %v16
  %v109 = vunpack.c.h.b16 %v16
  %v110 = vunpack.c.l.b16 %v17
  %v111 = vunpack.c.l.b16 %v18
  %v112 = vunpack.c.h.b16 %v18
  %v113 = vunpack.c.l.b16 %v19
  %v114 = vunpack.c.h.b16 %v19
  %v115 = vunpack.c.l.b16 %v20
  %v116 = vpack.c.b16 %v111, %v106
  %v117 = vpack.c.b16 %v112, %v107
  %v118 = vpack.c.b16 %v113, %v108
  %v119 = vpack.c.b16 %v114, %v109
  %v120 = vpack.c.b16 %v115, %v110
  %v197 = vunpack.c.l.b16 %v21
  %v198 = vunpack.c.l.b16 %v22
  %v199 = vunpack.c.l.b16 %v23
  %v200 = vunpack.c.l.b16 %v24
  %v201 = vunpack.c.l.b16 %v25
  %v202 = vunpack.c.l.b16 %v26
  %v203 = vunpack.c.l.b16 %v27
  %v204 = vunpack.c.l.b16 %v28
  %v205 = vunpack.c.l.b16 %v29
  %v206 = vunpack.c.l.b16 %v30
  %v207 = vunpack.c.l.b16 %v31
  %v208 = vunpack.c.l.b16 %v32
  %v209 = vunpack.c.l.b16 %v33
  %v210 = vunpack.c.l.b16 %v34
  %v211 = vunpack.c.l.b16 %v35
  %v212 = vunpack.c.l.b16 %v36
  %v213 = vunpack.c.l.b16 %v37
  %v214 = vunpack.c.l.b16 %v38
  %v215 = vunpack.c.l.b16 %v39
  %v216 = vunpack.c.l.b16 %v40
  %v217 = vunpack.c.l.b16 %v41
  %v218 = vunpack.c.l.b16 %v42
  %v219 = vunpack.c.l.b16 %v43
  %v220 = vunpack.c.l.b16 %v44
  %v221 = vunpack.c.l.b16 %v45
  %v222 = vunpack.c.l.b16 %v46
  %v223 = vunpack.c.l.b16 %v47
  %v224 = vunpack.c.l.b16 %v48
  %v225 = vunpack.c.l.b16 %v49
  %v226 = vunpack.c.l.b16 %v50
  %v227 = vunpack.c.l.b16 %v51
  %v228 = vunpack.c.l.b16 %v52
  %v229 = vunpack.c.l.b16 %v53
  %v230 = vunpack.c.l.b16 %v54
  %v231 = vunpack.c.l.b16 %v55
  %v232 = vunpack.c.l.b16 %v56
  %v233 = vunpack.c.l.b16 %v57
  %v234 = vunpack.c.l.b16 %v58
  %v235 = vunpack.c.l.b16 %v59
  %v236 = vunpack.c.l.b16 %v60
  %v237 = vunpack.c.l.b16 %v61
  %v238 = vunpack.c.l.b16 %v62
  %v239 = vunpack.c.l.b16 %v63
  %v240 = vunpack.c.l.b16 %v64
  %v241 = vunpack.c.l.b16 %v65
  %v242 = vunpack.c.l.b16 %v66
  %v243 = vunpack.c.l.b16 %v67
  %v244 = vunpack.c.l.b16 %v68
  %v245 = vunpack.c.l.b16 %v69
  %v246 = vunpack.c.l.b16 %v70
  %v247 = vunpack.c.l.b16 %v71
  %v248 = vunpack.c.l.b16 %v72
  %v249 = vunpack.c.l.b16 %v73
  %v250 = vunpack.c.l.b16 %v74
  %v251 = vunpack.c.l.b16 %v75
  %v252 = vunpack.c.l.b16 %v76
  %v253 = vunpack.c.l.b16 %v77
  %v254 = vunpack.c.l.b16 %v78
  %v255 = vunpack.c.l.b16 %v79
  %v256 = vunpack.c.l.b16 %v80
  %v257 = vunpack.c.l.b16 %v81
  %v258 = vunpack.c.l.b16 %v82
  %v259 = vunpack.c.l.b16 %v83
  %v260 = vunpack.c.l.b16 %v84
  %v261 = vunpack.c.l.b16 %v85
  %v262 = vunpack.c.l.b16 %v86
  %v263 = vunpack.c.l.b16 %v87
  %v264 = vunpack.c.l.b16 %v88
  %v265 = vunpack.c.l.b16 %v89
  %v266 = vunpack.c.l.b16 %v90
  %v267 = vunpack.c.l.b16 %v91
  %v268 = vunpack.c.l.b16 %v92
  %v269 = vpack.c.b16 %v198, %v197
  %v270 = vpack.c.b16 %v200, %v199
  %v271 = vpack.c.b16 %v202, %v201
  %v272 = vpack.c.b16 %v204, %v203
  %v273 = vpack.c.b16 %v206, %v205
  %v274 = vpack.c.b16 %v208, %v207
  %v275 = vpack.c.b16 %v210, %v209
  %v276 = vpack.c.b16 %v212, %v211
  %v277 = vpack.c.b16 %v214, %v213
  %v278 = vpack.c.b16 %v216, %v215
  %v279 = vpack.c.b16 %v218, %v217
  %v280 = vpack.c.b16 %v220, %v219
  %v281 = vpack.c.b16 %v222, %v221
  %v282 = vpack.c.b16 %v224, %v223
  %v283 = vpack.c.b16 %v226, %v225
  %v284 = vpack.c.b16 %v228, %v227
  %v285 = vpack.c.b16 %v230, %v229
  %v286 = vpack.c.b16 %v232, %v231
  %v287 = vpack.c.b16 %v234, %v233
  %v288 = vpack.c.b16 %v236, %v235
  %v289 = vpack.c.b16 %v238, %v237
  %v290 = vpack.c.b16 %v240, %v239
  %v291 = vpack.c.b16 %v242, %v241
  %v292 = vpack.c.b16 %v244, %v243
  %v293 = vpack.c.b16 %v246, %v245
  %v294 = vpack.c.b16 %v248, %v247
  %v295 = vpack.c.b16 %v250, %v249
  %v296 = vpack.c.b16 %v252, %v251
  %v297 = vpack.c.b16 %v254, %v253
  %v298 = vpack.c.b16 %v256, %v255
  %v299 = vpack.c.b16 %v258, %v257
  %v300 = vpack.c.b16 %v260, %v259
  %v301 = vpack.c.b16 %v262, %v261
  %v302 = vpack.c.b16 %v264, %v263
  %v303 = vpack.c.b16 %v266, %v265
  %v304 = vpack.c.b16 %v268, %v267
  %vm341 = vcmask 523264
  %v343 = vsel %vm341, %v120, 0
  %345 = vmatprep.subr.bf16.mxu0 0
  %346 = vmatpush1.bf16.msra.mxu0 %v276
  %347 = vmatprep.subr.bf16.mxu0 0
  %348 = vmatpush1.bf16.msra.mxu0 %v275
  %349 = vmatprep.subr.bf16.mxu0 0
  %350 = vmatpush1.bf16.msra.mxu0 %v274
  %351 = vmatprep.subr.bf16.mxu0 0
  %352 = vmatpush1.bf16.msra.mxu0 %v273
  %353 = vmatprep.subr.bf16.mxu0 0
  %354 = vmatpush1.bf16.msra.mxu0 %v272
  %355 = vmatprep.subr.bf16.mxu0 0
  %356 = vmatpush1.bf16.msra.mxu0 %v271
  %357 = vmatprep.subr.bf16.mxu0 0
  %358 = vmatpush1.bf16.msra.mxu0 %v270
  %359 = vmatprep.subr.bf16.mxu0 0
  %360 = vmatpush1.bf16.msra.mxu0 %v269
  %361 = vmatprep.subr.bf16.mxu0 0
  %362 = vmatpush2.bf16.msra.mxu0 %v284
  %363 = vmatprep.subr.bf16.mxu0 0
  %364 = vmatpush2.bf16.msra.mxu0 %v283
  %365 = vmatprep.subr.bf16.mxu0 0
  %366 = vmatpush2.bf16.msra.mxu0 %v282
  %367 = vmatprep.subr.bf16.mxu0 0
  %368 = vmatpush2.bf16.msra.mxu0 %v281
  %369 = vmatprep.subr.bf16.mxu0 0
  %370 = vmatpush2.bf16.msra.mxu0 %v280
  %371 = vmatprep.subr.bf16.mxu0 0
  %372 = vmatpush2.bf16.msra.mxu0 %v279
  %373 = vmatprep.subr.bf16.mxu0 0
  %374 = vmatpush2.bf16.msra.mxu0 %v278
  %375 = vmatprep.subr.bf16.mxu0 0
  %376 = vmatpush2.bf16.msra.mxu0 %v277
  %377 = vmatprep.mubr.bf16.mxu0 %v117
  %378 = vmatmul.mubr.bf16.gmra.mxu0 %v116
  %v379 = vpop.f32.mrf.mxu0
  %v380 = vadd.f32 %v98, %v379
  %v381 = vpop.f32.mrf.mxu0
  %v382 = vpop.f32.mrf.mxu0
  %v383 = vadd.f32 %v98, %v382
  %v384 = vpop.f32.mrf.mxu0
  %385 = vdwg.mxu0
  %386 = vmatprep.subr.bf16.mxu0 0
  %387 = vmatpush1.bf16.msra.mxu0 %v292
  %388 = vmatprep.subr.bf16.mxu0 0
  %389 = vmatpush1.bf16.msra.mxu0 %v291
  %390 = vmatprep.subr.bf16.mxu0 0
  %391 = vmatpush1.bf16.msra.mxu0 %v290
  %392 = vmatprep.subr.bf16.mxu0 0
  %393 = vmatpush1.bf16.msra.mxu0 %v289
  %394 = vmatprep.subr.bf16.mxu0 0
  %395 = vmatpush1.bf16.msra.mxu0 %v288
  %396 = vmatprep.subr.bf16.mxu0 0
  %397 = vmatpush1.bf16.msra.mxu0 %v287
  %398 = vmatprep.subr.bf16.mxu0 0
  %399 = vmatpush1.bf16.msra.mxu0 %v286
  %400 = vmatprep.subr.bf16.mxu0 0
  %401 = vmatpush1.bf16.msra.mxu0 %v285
  %402 = vmatprep.subr.bf16.mxu0 0
  %403 = vmatpush2.bf16.msra.mxu0 %v300
  %404 = vmatprep.subr.bf16.mxu0 0
  %405 = vmatpush2.bf16.msra.mxu0 %v299
  %406 = vmatprep.subr.bf16.mxu0 0
  %407 = vmatpush2.bf16.msra.mxu0 %v298
  %408 = vmatprep.subr.bf16.mxu0 0
  %409 = vmatpush2.bf16.msra.mxu0 %v297
  %410 = vmatprep.subr.bf16.mxu0 0
  %411 = vmatpush2.bf16.msra.mxu0 %v296
  %412 = vmatprep.subr.bf16.mxu0 0
  %413 = vmatpush2.bf16.msra.mxu0 %v295
  %414 = vmatprep.subr.bf16.mxu0 0
  %415 = vmatpush2.bf16.msra.mxu0 %v294
  %416 = vmatprep.subr.bf16.mxu0 0
  %417 = vmatpush2.bf16.msra.mxu0 %v293
  %418 = vmatprep.mubr.bf16.mxu0 %v119
  %419 = vmatmul.mubr.bf16.gmra.mxu0 %v118
  %v420 = vpop.f32.mrf.mxu0
  %v421 = vadd.f32 %v380, %v420
  %v422 = vpop.f32.mrf.mxu0
  %v423 = vpop.f32.mrf.mxu0
  %v424 = vadd.f32 %v383, %v423
  %v425 = vpop.f32.mrf.mxu0
  %426 = vdwg.mxu0
  %427 = vmatprep.subr.bf16.mxu0 0
  %428 = vmatpush1.bf16.msra.mxu0 0
  %429 = vmatprep.subr.bf16.mxu0 0
  %430 = vmatpush1.bf16.msra.mxu0 0
  %431 = vmatprep.subr.bf16.mxu0 0
  %432 = vmatpush1.bf16.msra.mxu0 0
  %433 = vmatprep.subr.bf16.mxu0 0
  %434 = vmatpush1.bf16.msra.mxu0 0
  %435 = vmatprep.subr.bf16.mxu0 0
  %436 = vmatpush1.bf16.msra.mxu0 %v304
  %437 = vmatprep.subr.bf16.mxu0 0
  %438 = vmatpush1.bf16.msra.mxu0 %v303
  %439 = vmatprep.subr.bf16.mxu0 0
  %440 = vmatpush1.bf16.msra.mxu0 %v302
  %441 = vmatprep.subr.bf16.mxu0 0
  %442 = vmatpush1.bf16.msra.mxu0 %v301
  %443 = vmatprep.subr.bf16.mxu0 0
  %444 = vmatpush2.bf16.msra.mxu0 0
  %445 = vmatprep.subr.bf16.mxu0 0
  %446 = vmatpush2.bf16.msra.mxu0 0
  %447 = vmatprep.subr.bf16.mxu0 0
  %448 = vmatpush2.bf16.msra.mxu0 0
  %449 = vmatprep.subr.bf16.mxu0 0
  %450 = vmatpush2.bf16.msra.mxu0 0
  %451 = vmatprep.subr.bf16.mxu0 0
  %452 = vmatpush2.bf16.msra.mxu0 0
  %453 = vmatprep.subr.bf16.mxu0 0
  %454 = vmatpush2.bf16.msra.mxu0 0
  %455 = vmatprep.subr.bf16.mxu0 0
  %456 = vmatpush2.bf16.msra.mxu0 0
  %457 = vmatprep.subr.bf16.mxu0 0
  %458 = vmatpush2.bf16.msra.mxu0 0
  %459 = vmatprep.mubr.bf16.mxu0 0
  %460 = vmatmul.mubr.bf16.gmra.mxu0 %v343
  %v461 = vpop.f32.mrf.mxu0
  %v462 = vadd.f32 %v421, %v461
  %v463 = vpop.f32.mrf.mxu0
  %v464 = vpop.f32.mrf.mxu0
  %v465 = vadd.f32 %v424, %v464
  %v466 = vpop.f32.mrf.mxu0
  %467 = vdwg.mxu0
  %v468 = vmax.f32 %v462, 0.0
  %v469 = vmax.f32 %v465, 0.0
  %v470 = vpack.c.bf16 %v469, %v468
  %v472 = vunpack.c.l.b16 %v470
  %v473 = vunpack.c.h.b16 %v470
  %v474 = vpack.c.b16 %v472, %v472
  %v475 = vpack.c.b16 %v473, %v473
  %478 = vst [vmem:[%s3] sm:$0xf] %v474
  %479 = vst [vmem:[%s3 + $0x4] sm:$0xf] %v475
  // Predicated region
  $region14: #{classifier_forward.4} parent=0 // pred_check
    _
  $region15: #{classifier_forward.4} parent=0 // pred_check_branch
    %481 = sbr.rel (0) target = $region17
  $region16: #{classifier_forward.4} parent=0 // pred_region
    _
  $region17: #{classifier_forward.4} parent=0 // pred_fallthru
    _
  // Predicated region
  $region18: #{classifier_forward.4} parent=0 // pred_check
    _
  $region19: #{classifier_forward.4} parent=0 // pred_check_branch
    %483 = sbr.rel (0) target = $region21
  $region20: #{classifier_forward.4} parent=0 // pred_region
    _
  $region21: #{classifier_forward.4} parent=0 // pred_fallthru
    _

// kernel: classifier_forward.5
$region0: #{classifier_forward.5}
  #allocation0 [shape = 'u32[]', space=smem, size = 0x4, offset = 0x4, fixed_abs, tag = 'smem constant byte address 0x4 - core index']
  #allocation1 [shape = 'u32[144,128]{1,0:T(1,128)}', space=vmem, size = 0x12000, scoped, tag = 'internal scratch']
  #allocation2 [shape = 'f32[2,32]{1,0:T(2,128)}', space=vmem, size = 0x400, scoped, tag = 'scratch operand']
  %s0 = inlined_call_operand.vmem [shape: bf16[2,1024], index: 0, kind: input, shape index: {}]
  %s1 = inlined_call_operand.vmem [shape: bf16[1024,32], index: 1, kind: input, shape index: {}]
  %s2 = inlined_call_operand.vmem [shape: f32[1,32], index: 2, kind: input, shape index: {}]
  %s3 = inlined_call_operand.vmem [shape: f32[32,8], index: 3, kind: input, shape index: {}]
  %s4 = inlined_call_operand.vmem [shape: f32[1,8], index: 4, kind: input, shape index: {}]
  %s5 = inlined_call_operand.hbm [shape: f32[2,8], index: 5, kind: output, shape index: {}]
  %s6 = sld [smem:[#allocation0]]
  $region38: #{classifier_forward.5} parent=0
    _
  %s8 = ssub.s32 1, %s6
  %s9 = scalar_select 0, %s8, %s6
  $region1: #{classifier_forward.5} parent=0
    #allocation3 [shape = 'u8[1024]{0}', space=vmem, size = 0x400, scoped, tag = 'output window, operand 0, single buffered']
    #allocation4 [shape = 's32[1]{0}', space=sflag, size = 0x4, scoped, tag = 'scoped memory for classifier_forward.5']
    %10 = vsyncpa [#allocation4], 0
    // Predicated region
    $region2: #{classifier_forward.5} parent=1 // pred_check
      _
    $region3: #{classifier_forward.5} parent=1 // pred_check_branch
      %12 = sbr.rel (0) target = $region5
    $region4: #{classifier_forward.5} parent=1 // pred_region
      _
    $region5: #{classifier_forward.5} parent=1 // pred_fallthru
      _
    // Predicated region
    $region6: #{classifier_forward.5} parent=1 // pred_check
      _
    $region7: #{classifier_forward.5} parent=1 // pred_check_branch
      %14 = sbr.rel (0) target = $region9
    $region8: #{classifier_forward.5} parent=1 // pred_region
      _
    $region9: #{classifier_forward.5} parent=1 // pred_fallthru
      _
    // Predicated region
    $region10: #{classifier_forward.5} parent=1 // pred_check
      _
    $region11: #{classifier_forward.5} parent=1 // pred_check_branch
      %16 = sbr.rel (0) target = $region13
    $region12: #{classifier_forward.5} parent=1 // pred_region
      _
    $region13: #{classifier_forward.5} parent=1 // pred_fallthru
      _
    // Predicated region
    $region14: #{classifier_forward.5} parent=1 // pred_check
      _
    $region15: #{classifier_forward.5} parent=1 // pred_check_branch
      %18 = sbr.rel (0) target = $region17
    $region16: #{classifier_forward.5} parent=1 // pred_region
      _
    $region17: #{classifier_forward.5} parent=1 // pred_fallthru
      _
    // Predicated region
    $region18: #{classifier_forward.5} parent=1 // pred_check
      _
    $region19: #{classifier_forward.5} parent=1 // pred_check_branch
      %20 = sbr.rel (0) target = $region21
    $region20: #{classifier_forward.5} parent=1 // pred_region
      _
    $region21: #{classifier_forward.5} parent=1 // pred_fallthru
      _
    %p22 = scmp.eq.s32.totalorder 0, 0
    // Predicated region
    $region22: #{classifier_forward.5} parent=1 // pred_check
      %p23 = pneg %p22
    $region23: #{classifier_forward.5} parent=1 // pred_check_branch
      %25 = sbr.rel (%p23) target = $region25
    $region24: #{classifier_forward.5} parent=1 // pred_region
      %vm26 = vcmask 254976
      %27 = vst.msk [vmem:[#allocation2] sm:$0x3] %vm26, 0.0
    $region25: #{classifier_forward.5} parent=1 // pred_fallthru
      _
    %v28 = vld [vmem:[#allocation2] sm:$0x3]
    %v29 = vld [vmem:[%s0] sm:$0xff]
    %v30 = vld [vmem:[%s1] sm:$0xf]
    %v31 = vld [vmem:[%s1 + $0x4] sm:$0xf]
    %v32 = vld [vmem:[%s1 + $0x8] sm:$0xf]
    %v33 = vld [vmem:[%s1 + $0xc] sm:$0xf]
    %v34 = vld [vmem:[%s1 + $0x10] sm:$0xf]
    %v35 = vld [vmem:[%s1 + $0x14] sm:$0xf]
    %v36 = vld [vmem:[%s1 + $0x18] sm:$0xf]
    %v37 = vld [vmem:[%s1 + $0x1c] sm:$0xf]
    %v38 = vld [vmem:[%s1 + $0x20] sm:$0xf]
    %v39 = vld [vmem:[%s1 + $0x24] sm:$0xf]
    %v40 = vld [vmem:[%s1 + $0x28] sm:$0xf]
    %v41 = vld [vmem:[%s1 + $0x2c] sm:$0xf]
    %v42 = vld [vmem:[%s1 + $0x30] sm:$0xf]
    %v43 = vld [vmem:[%s1 + $0x34] sm:$0xf]
    %v44 = vld [vmem:[%s1 + $0x38] sm:$0xf]
    %v45 = vld [vmem:[%s1 + $0x3c] sm:$0xf]
    %v46 = vld [vmem:[%s1 + $0x40] sm:$0xf]
    %v47 = vld [vmem:[%s1 + $0x44] sm:$0xf]
    %v48 = vld [vmem:[%s1 + $0x48] sm:$0xf]
    %v49 = vld [vmem:[%s1 + $0x4c] sm:$0xf]
    %v50 = vld [vmem:[%s1 + $0x50] sm:$0xf]
    %v51 = vld [vmem:[%s1 + $0x54] sm:$0xf]
    %v52 = vld [vmem:[%s1 + $0x58] sm:$0xf]
    %v53 = vld [vmem:[%s1 + $0x5c] sm:$0xf]
    %v54 = vld [vmem:[%s1 + $0x60] sm:$0xf]
    %v55 = vld [vmem:[%s1 + $0x64] sm:$0xf]
    %v56 = vld [vmem:[%s1 + $0x68] sm:$0xf]
    %v57 = vld [vmem:[%s1 + $0x6c] sm:$0xf]
    %v58 = vld [vmem:[%s1 + $0x70] sm:$0xf]
    %v59 = vld [vmem:[%s1 + $0x74] sm:$0xf]
    %v60 = vld [vmem:[%s1 + $0x78] sm:$0xf]
    %v61 = vld [vmem:[%s1 + $0x7c] sm:$0xf]
    %v62 = vld [vmem:[%s1 + $0x80] sm:$0xf]
    %v63 = vld [vmem:[%s1 + $0x84] sm:$0xf]
    %v64 = vld [vmem:[%s1 + $0x88] sm:$0xf]
    %v65 = vld [vmem:[%s1 + $0x8c] sm:$0xf]
    %v66 = vld [vmem:[%s1 + $0x90] sm:$0xf]
    %v67 = vld [vmem:[%s1 + $0x94] sm:$0xf]
    %v68 = vld [vmem:[%s1 + $0x98] sm:$0xf]
    %v69 = vld [vmem:[%s1 + $0x9c] sm:$0xf]
    %v70 = vld [vmem:[%s1 + $0xa0] sm:$0xf]
    %v71 = vld [vmem:[%s1 + $0xa4] sm:$0xf]
    %v72 = vld [vmem:[%s1 + $0xa8] sm:$0xf]
    %v73 = vld [vmem:[%s1 + $0xac] sm:$0xf]
    %v74 = vld [vmem:[%s1 + $0xb0] sm:$0xf]
    %v75 = vld [vmem:[%s1 + $0xb4] sm:$0xf]
    %v76 = vld [vmem:[%s1 + $0xb8] sm:$0xf]
    %v77 = vld [vmem:[%s1 + $0xbc] sm:$0xf]
    %v78 = vld [vmem:[%s1 + $0xc0] sm:$0xf]
    %v79 = vld [vmem:[%s1 + $0xc4] sm:$0xf]
    %v80 = vld [vmem:[%s1 + $0xc8] sm:$0xf]
    %v81 = vld [vmem:[%s1 + $0xcc] sm:$0xf]
    %v82 = vld [vmem:[%s1 + $0xd0] sm:$0xf]
    %v83 = vld [vmem:[%s1 + $0xd4] sm:$0xf]
    %v84 = vld [vmem:[%s1 + $0xd8] sm:$0xf]
    %v85 = vld [vmem:[%s1 + $0xdc] sm:$0xf]
    %v86 = vld [vmem:[%s1 + $0xe0] sm:$0xf]
    %v87 = vld [vmem:[%s1 + $0xe4] sm:$0xf]
    %v88 = vld [vmem:[%s1 + $0xe8] sm:$0xf]
    %v89 = vld [vmem:[%s1 + $0xec] sm:$0xf]
    %v90 = vld [vmem:[%s1 + $0xf0] sm:$0xf]
    %v91 = vld [vmem:[%s1 + $0xf4] sm:$0xf]
    %v92 = vld [vmem:[%s1 + $0xf8] sm:$0xf]
    %v93 = vld [vmem:[%s1 + $0xfc] sm:$0xf]
    %v94 = vld [vmem:[%s1 + $0x100] sm:$0xf]
    %v95 = vld [vmem:[%s1 + $0x104] sm:$0xf]
    %v96 = vld [vmem:[%s1 + $0x108] sm:$0xf]
    %v97 = vld [vmem:[%s1 + $0x10c] sm:$0xf]
    %v98 = vld [vmem:[%s1 + $0x110] sm:$0xf]
    %v99 = vld [vmem:[%s1 + $0x114] sm:$0xf]
    %v100 = vld [vmem:[%s1 + $0x118] sm:$0xf]
    %v101 = vld [vmem:[%s1 + $0x11c] sm:$0xf]
    %v102 = vld [vmem:[%s1 + $0x120] sm:$0xf]
    %v103 = vld [vmem:[%s1 + $0x124] sm:$0xf]
    %v104 = vld [vmem:[%s1 + $0x128] sm:$0xf]
    %v105 = vld [vmem:[%s1 + $0x12c] sm:$0xf]
    %v106 = vld [vmem:[%s1 + $0x130] sm:$0xf]
    %v107 = vld [vmem:[%s1 + $0x134] sm:$0xf]
    %v108 = vld [vmem:[%s1 + $0x138] sm:$0xf]
    %v109 = vld [vmem:[%s1 + $0x13c] sm:$0xf]
    %v110 = vld [vmem:[%s1 + $0x140] sm:$0xf]
    %v111 = vld [vmem:[%s1 + $0x144] sm:$0xf]
    %v112 = vld [vmem:[%s1 + $0x148] sm:$0xf]
    %v113 = vld [vmem:[%s1 + $0x14c] sm:$0xf]
    %v114 = vld [vmem:[%s1 + $0x150] sm:$0xf]
    %v115 = vld [vmem:[%s1 + $0x154] sm:$0xf]
    %v116 = vld [vmem:[%s1 + $0x158] sm:$0xf]
    %v117 = vld [vmem:[%s1 + $0x15c] sm:$0xf]
    %v118 = vld [vmem:[%s1 + $0x160] sm:$0xf]
    %v119 = vld [vmem:[%s1 + $0x164] sm:$0xf]
    %v120 = vld [vmem:[%s1 + $0x168] sm:$0xf]
    %v121 = vld [vmem:[%s1 + $0x16c] sm:$0xf]
    %v122 = vld [vmem:[%s1 + $0x170] sm:$0xf]
    %v123 = vld [vmem:[%s1 + $0x174] sm:$0xf]
    %v124 = vld [vmem:[%s1 + $0x178] sm:$0xf]
    %v125 = vld [vmem:[%s1 + $0x17c] sm:$0xf]
    %v126 = vld [vmem:[%s1 + $0x180] sm:$0xf]
    %v127 = vld [vmem:[%s1 + $0x184] sm:$0xf]
    %v128 = vld [vmem:[%s1 + $0x188] sm:$0xf]
    %v129 = vld [vmem:[%s1 + $0x18c] sm:$0xf]
    %v130 = vld [vmem:[%s1 + $0x190] sm:$0xf]
    %v131 = vld [vmem:[%s1 + $0x194] sm:$0xf]
    %v132 = vld [vmem:[%s1 + $0x198] sm:$0xf]
    %v133 = vld [vmem:[%s1 + $0x19c] sm:$0xf]
    %v134 = vld [vmem:[%s1 + $0x1a0] sm:$0xf]
    %v135 = vld [vmem:[%s1 + $0x1a4] sm:$0xf]
    %v136 = vld [vmem:[%s1 + $0x1a8] sm:$0xf]
    %v137 = vld [vmem:[%s1 + $0x1ac] sm:$0xf]
    %v138 = vld [vmem:[%s1 + $0x1b0] sm:$0xf]
    %v139 = vld [vmem:[%s1 + $0x1b4] sm:$0xf]
    %v140 = vld [vmem:[%s1 + $0x1b8] sm:$0xf]
    %v141 = vld [vmem:[%s1 + $0x1bc] sm:$0xf]
    %v142 = vld [vmem:[%s1 + $0x1c0] sm:$0xf]
    %v143 = vld [vmem:[%s1 + $0x1c4] sm:$0xf]
    %v144 = vld [vmem:[%s1 + $0x1c8] sm:$0xf]
    %v145 = vld [vmem:[%s1 + $0x1cc] sm:$0xf]
    %v146 = vld [vmem:[%s1 + $0x1d0] sm:$0xf]
    %v147 = vld [vmem:[%s1 + $0x1d4] sm:$0xf]
    %v148 = vld [vmem:[%s1 + $0x1d8] sm:$0xf]
    %v149 = vld [vmem:[%s1 + $0x1dc] sm:$0xf]
    %v150 = vld [vmem:[%s1 + $0x1e0] sm:$0xf]
    %v151 = vld [vmem:[%s1 + $0x1e4] sm:$0xf]
    %v152 = vld [vmem:[%s1 + $0x1e8] sm:$0xf]
    %v153 = vld [vmem:[%s1 + $0x1ec] sm:$0xf]
    %v154 = vld [vmem:[%s1 + $0x1f0] sm:$0xf]
    %v155 = vld [vmem:[%s1 + $0x1f4] sm:$0xf]
    %v156 = vld [vmem:[%s1 + $0x1f8] sm:$0xf]
    %v157 = vld [vmem:[%s1 + $0x1fc] sm:$0xf]
    %v159 = vcombine.high %v29, %v29
    %v161 = vunpack.c.l.s4 1966171168
    %v162 = vunpack.c.0.s8 %v161
    %v163 = vlaneseq
    %v164 = vshrl.u32 %v163, 7
    %v165 = vsub.s32 %v162, %v164
    %v166 = vrot.slane %v29, %v165
    %v168 = vunpack.c.l.s4 1966171168
    %v169 = vunpack.c.0.s8 %v168
    %v170 = vlaneseq
    %v171 = vshrl.u32 %v170, 7
    %v172 = vsub.s32 %v169, %v171
    %v173 = vrot.slane %v159, %v172
    %v174 = vcombine.high %v166, %v166
    %v175 = vcombine.high %v173, %v173
    %v177 = vunpack.c.l.s4 1966171168
    %v178 = vunpack.c.0.s8 %v177
    %v179 = vlaneseq
    %v180 = vshrl.u32 %v179, 7
    %v181 = vsub.s32 %v178, %v180
    %v182 = vrot.slane %v166, %v181
    %v184 = vunpack.c.l.s4 1966171168
    %v185 = vunpack.c.0.s8 %v184
    %v186 = vlaneseq
    %v187 = vshrl.u32 %v186, 7
    %v188 = vsub.s32 %v185, %v187
    %v189 = vrot.slane %v173, %v188
    %v191 = vunpack.c.l.s4 1966171168
    %v192 = vunpack.c.0.s8 %v191
    %v193 = vlaneseq
    %v194 = vshrl.u32 %v193, 7
    %v195 = vsub.s32 %v192, %v194
    %v196 = vrot.slane %v174, %v195
    %v198 = vunpack.c.l.s4 1966171168
    %v199 = vunpack.c.0.s8 %v198
    %v200 = vlaneseq
    %v201 = vshrl.u32 %v200, 7
    %v202 = vsub.s32 %v199, %v201
    %v203 = vrot.slane %v175, %v202
    %v204 = vcombine.high %v182, %v182
    %v205 = vcombine.high %v189, %v189
    %v206 = vcombine.high %v196, %v196
    %v207 = vcombine.high %v203, %v203
    %v344 = vunpack.c.l.b16 %v30
    %v345 = vunpack.c.l.b16 %v31
    %v346 = vunpack.c.l.b16 %v32
    %v347 = vunpack.c.l.b16 %v33
    %v348 = vunpack.c.l.b16 %v34
    %v349 = vunpack.c.l.b16 %v35
    %v350 = vunpack.c.l.b16 %v36
    %v351 = vunpack.c.l.b16 %v37
    %v352 = vunpack.c.l.b16 %v38
    %v353 = vunpack.c.l.b16 %v39
    %v354 = vunpack.c.l.b16 %v40
    %v355 = vunpack.c.l.b16 %v41
    %v356 = vunpack.c.l.b16 %v42
    %v357 = vunpack.c.l.b16 %v43
    %v358 = vunpack.c.l.b16 %v44
    %v359 = vunpack.c.l.b16 %v45
    %v360 = vunpack.c.l.b16 %v46
    %v361 = vunpack.c.l.b16 %v47
    %v362 = vunpack.c.l.b16 %v48
    %v363 = vunpack.c.l.b16 %v49
    %v364 = vunpack.c.l.b16 %v50
    %v365 = vunpack.c.l.b16 %v51
    %v366 = vunpack.c.l.b16 %v52
    %v367 = vunpack.c.l.b16 %v53
    %v368 = vunpack.c.l.b16 %v54
    %v369 = vunpack.c.l.b16 %v55
    %v370 = vunpack.c.l.b16 %v56
    %v371 = vunpack.c.l.b16 %v57
    %v372 = vunpack.c.l.b16 %v58
    %v373 = vunpack.c.l.b16 %v59
    %v374 = vunpack.c.l.b16 %v60
    %v375 = vunpack.c.l.b16 %v61
    %v376 = vunpack.c.l.b16 %v62
    %v377 = vunpack.c.l.b16 %v63
    %v378 = vunpack.c.l.b16 %v64
    %v379 = vunpack.c.l.b16 %v65
    %v380 = vunpack.c.l.b16 %v66
    %v381 = vunpack.c.l.b16 %v67
    %v382 = vunpack.c.l.b16 %v68
    %v383 = vunpack.c.l.b16 %v69
    %v384 = vunpack.c.l.b16 %v70
    %v385 = vunpack.c.l.b16 %v71
    %v386 = vunpack.c.l.b16 %v72
    %v387 = vunpack.c.l.b16 %v73
    %v388 = vunpack.c.l.b16 %v74
    %v389 = vunpack.c.l.b16 %v75
    %v390 = vunpack.c.l.b16 %v76
    %v391 = vunpack.c.l.b16 %v77
    %v392 = vunpack.c.l.b16 %v78
    %v393 = vunpack.c.l.b16 %v79
    %v394 = vunpack.c.l.b16 %v80
    %v395 = vunpack.c.l.b16 %v81
    %v396 = vunpack.c.l.b16 %v82
    %v397 = vunpack.c.l.b16 %v83
    %v398 = vunpack.c.l.b16 %v84
    %v399 = vunpack.c.l.b16 %v85
    %v400 = vunpack.c.l.b16 %v86
    %v401 = vunpack.c.l.b16 %v87
    %v402 = vunpack.c.l.b16 %v88
    %v403 = vunpack.c.l.b16 %v89
    %v404 = vunpack.c.l.b16 %v90
    %v405 = vunpack.c.l.b16 %v91
    %v406 = vunpack.c.l.b16 %v92
    %v407 = vunpack.c.l.b16 %v93
    %v408 = vunpack.c.l.b16 %v94
    %v409 = vunpack.c.l.b16 %v95
    %v410 = vunpack.c.l.b16 %v96
    %v411 = vunpack.c.l.b16 %v97
    %v412 = vunpack.c.l.b16 %v98
    %v413 = vunpack.c.l.b16 %v99
    %v414 = vunpack.c.l.b16 %v100
    %v415 = vunpack.c.l.b16 %v101
    %v416 = vunpack.c.l.b16 %v102
    %v417 = vunpack.c.l.b16 %v103
    %v418 = vunpack.c.l.b16 %v104
    %v419 = vunpack.c.l.b16 %v105
    %v420 = vunpack.c.l.b16 %v106
    %v421 = vunpack.c.l.b16 %v107
    %v422 = vunpack.c.l.b16 %v108
    %v423 = vunpack.c.l.b16 %v109
    %v424 = vunpack.c.l.b16 %v110
    %v425 = vunpack.c.l.b16 %v111
    %v426 = vunpack.c.l.b16 %v112
    %v427 = vunpack.c.l.b16 %v113
    %v428 = vunpack.c.l.b16 %v114
    %v429 = vunpack.c.l.b16 %v115
    %v430 = vunpack.c.l.b16 %v116
    %v431 = vunpack.c.l.b16 %v117
    %v432 = vunpack.c.l.b16 %v118
    %v433 = vunpack.c.l.b16 %v119
    %v434 = vunpack.c.l.b16 %v120
    %v435 = vunpack.c.l.b16 %v121
    %v436 = vunpack.c.l.b16 %v122
    %v437 = vunpack.c.l.b16 %v123
    %v438 = vunpack.c.l.b16 %v124
    %v439 = vunpack.c.l.b16 %v125
    %v440 = vunpack.c.l.b16 %v126
    %v441 = vunpack.c.l.b16 %v127
    %v442 = vunpack.c.l.b16 %v128
    %v443 = vunpack.c.l.b16 %v129
    %v444 = vunpack.c.l.b16 %v130
    %v445 = vunpack.c.l.b16 %v131
    %v446 = vunpack.c.l.b16 %v132
    %v447 = vunpack.c.l.b16 %v133
    %v448 = vunpack.c.l.b16 %v134
    %v449 = vunpack.c.l.b16 %v135
    %v450 = vunpack.c.l.b16 %v136
    %v451 = vunpack.c.l.b16 %v137
    %v452 = vunpack.c.l.b16 %v138
    %v453 = vunpack.c.l.b16 %v139
    %v454 = vunpack.c.l.b16 %v140
    %v455 = vunpack.c.l.b16 %v141
    %v456 = vunpack.c.l.b16 %v142
    %v457 = vunpack.c.l.b16 %v143
    %v458 = vunpack.c.l.b16 %v144
    %v459 = vunpack.c.l.b16 %v145
    %v460 = vunpack.c.l.b16 %v146
    %v461 = vunpack.c.l.b16 %v147
    %v462 = vunpack.c.l.b16 %v148
    %v463 = vunpack.c.l.b16 %v149
    %v464 = vunpack.c.l.b16 %v150
    %v465 = vunpack.c.l.b16 %v151
    %v466 = vunpack.c.l.b16 %v152
    %v467 = vunpack.c.l.b16 %v153
    %v468 = vunpack.c.l.b16 %v154
    %v469 = vunpack.c.l.b16 %v155
    %v470 = vunpack.c.l.b16 %v156
    %v471 = vunpack.c.l.b16 %v157
    %v472 = vpack.c.b16 %v345, %v344
    %v473 = vpack.c.b16 %v347, %v346
    %v474 = vpack.c.b16 %v349, %v348
    %v475 = vpack.c.b16 %v351, %v350
    %v476 = vpack.c.b16 %v353, %v352
    %v477 = vpack.c.b16 %v355, %v354
    %v478 = vpack.c.b16 %v357, %v356
    %v479 = vpack.c.b16 %v359, %v358
    %v480 = vpack.c.b16 %v361, %v360
    %v481 = vpack.c.b16 %v363, %v362
    %v482 = vpack.c.b16 %v365, %v364
    %v483 = vpack.c.b16 %v367, %v366
    %v484 = vpack.c.b16 %v369, %v368
    %v485 = vpack.c.b16 %v371, %v370
    %v486 = vpack.c.b16 %v373, %v372
    %v487 = vpack.c.b16 %v375, %v374
    %v488 = vpack.c.b16 %v377, %v376
    %v489 = vpack.c.b16 %v379, %v378
    %v490 = vpack.c.b16 %v381, %v380
    %v491 = vpack.c.b16 %v383, %v382
    %v492 = vpack.c.b16 %v385, %v384
    %v493 = vpack.c.b16 %v387, %v386
    %v494 = vpack.c.b16 %v389, %v388
    %v495 = vpack.c.b16 %v391, %v390
    %v496 = vpack.c.b16 %v393, %v392
    %v497 = vpack.c.b16 %v395, %v394
    %v498 = vpack.c.b16 %v397, %v396
    %v499 = vpack.c.b16 %v399, %v398
    %v500 = vpack.c.b16 %v401, %v400
    %v501 = vpack.c.b16 %v403, %v402
    %v502 = vpack.c.b16 %v405, %v404
    %v503 = vpack.c.b16 %v407, %v406
    %v504 = vpack.c.b16 %v409, %v408
    %v505 = vpack.c.b16 %v411, %v410
    %v506 = vpack.c.b16 %v413, %v412
    %v507 = vpack.c.b16 %v415, %v414
    %v508 = vpack.c.b16 %v417, %v416
    %v509 = vpack.c.b16 %v419, %v418
    %v510 = vpack.c.b16 %v421, %v420
    %v511 = vpack.c.b16 %v423, %v422
    %v512 = vpack.c.b16 %v425, %v424
    %v513 = vpack.c.b16 %v427, %v426
    %v514 = vpack.c.b16 %v429, %v428
    %v515 = vpack.c.b16 %v431, %v430
    %v516 = vpack.c.b16 %v433, %v432
    %v517 = vpack.c.b16 %v435, %v434
    %v518 = vpack.c.b16 %v437, %v436
    %v519 = vpack.c.b16 %v439, %v438
    %v520 = vpack.c.b16 %v441, %v440
    %v521 = vpack.c.b16 %v443, %v442
    %v522 = vpack.c.b16 %v445, %v444
    %v523 = vpack.c.b16 %v447, %v446
    %v524 = vpack.c.b16 %v449, %v448
    %v525 = vpack.c.b16 %v451, %v450
    %v526 = vpack.c.b16 %v453, %v452
    %v527 = vpack.c.b16 %v455, %v454
    %v528 = vpack.c.b16 %v457, %v456
    %v529 = vpack.c.b16 %v459, %v458
    %v530 = vpack.c.b16 %v461, %v460
    %v531 = vpack.c.b16 %v463, %v462
    %v532 = vpack.c.b16 %v465, %v464
    %v533 = vpack.c.b16 %v467, %v466
    %v534 = vpack.c.b16 %v469, %v468
    %v535 = vpack.c.b16 %v471, %v470
    %600 = vmatprep.subr.bf16.mxu0 0
    %601 = vmatpush1.bf16.msra.mxu0 %v479
    %602 = vmatprep.subr.bf16.mxu0 0
    %603 = vmatpush1.bf16.msra.mxu0 %v478
    %604 = vmatprep.subr.bf16.mxu0 0
    %605 = vmatpush1.bf16.msra.mxu0 %v477
    %606 = vmatprep.subr.bf16.mxu0 0
    %607 = vmatpush1.bf16.msra.mxu0 %v476
    %608 = vmatprep.subr.bf16.mxu0 0
    %609 = vmatpush1.bf16.msra.mxu0 %v475
    %610 = vmatprep.subr.bf16.mxu0 0
    %611 = vmatpush1.bf16.msra.mxu0 %v474
    %612 = vmatprep.subr.bf16.mxu0 0
    %613 = vmatpush1.bf16.msra.mxu0 %v473
    %614 = vmatprep.subr.bf16.mxu0 0
    %615 = vmatpush1.bf16.msra.mxu0 %v472
    %616 = vmatprep.subr.bf16.mxu0 0
    %617 = vmatpush2.bf16.msra.mxu0 %v487
    %618 = vmatprep.subr.bf16.mxu0 0
    %619 = vmatpush2.bf16.msra.mxu0 %v486
    %620 = vmatprep.subr.bf16.mxu0 0
    %621 = vmatpush2.bf16.msra.mxu0 %v485
    %622 = vmatprep.subr.bf16.mxu0 0
    %623 = vmatpush2.bf16.msra.mxu0 %v484
    %624 = vmatprep.subr.bf16.mxu0 0
    %625 = vmatpush2.bf16.msra.mxu0 %v483
    %626 = vmatprep.subr.bf16.mxu0 0
    %627 = vmatpush2.bf16.msra.mxu0 %v482
    %628 = vmatprep.subr.bf16.mxu0 0
    %629 = vmatpush2.bf16.msra.mxu0 %v481
    %630 = vmatprep.subr.bf16.mxu0 0
    %631 = vmatpush2.bf16.msra.mxu0 %v480
    %632 = vmatprep.mubr.bf16.mxu0 %v196
    %633 = vmatmul.mubr.bf16.gmra.mxu0 %v182
    %v634 = vpop.f32.mrf.mxu0
    %v635 = vadd.f32 0.0, %v634
    %v636 = vpop.f32.mrf.mxu0
    %v637 = vpop.f32.mrf.mxu0
    %v638 = vpop.f32.mrf.mxu0
    %639 = vdwg.mxu0
    %640 = vmatprep.subr.bf16.mxu0 0
    %641 = vmatpush1.bf16.msra.mxu0 %v495
    %642 = vmatprep.subr.bf16.mxu0 0
    %643 = vmatpush1.bf16.msra.mxu0 %v494
    %644 = vmatprep.subr.bf16.mxu0 0
    %645 = vmatpush1.bf16.msra.mxu0 %v493
    %646 = vmatprep.subr.bf16.mxu0 0
    %647 = vmatpush1.bf16.msra.mxu0 %v492
    %648 = vmatprep.subr.bf16.mxu0 0
    %649 = vmatpush1.bf16.msra.mxu0 %v491
    %650 = vmatprep.subr.bf16.mxu0 0
    %651 = vmatpush1.bf16.msra.mxu0 %v490
    %652 = vmatprep.subr.bf16.mxu0 0
    %653 = vmatpush1.bf16.msra.mxu0 %v489
    %654 = vmatprep.subr.bf16.mxu0 0
    %655 = vmatpush1.bf16.msra.mxu0 %v488
    %656 = vmatprep.subr.bf16.mxu0 0
    %657 = vmatpush2.bf16.msra.mxu0 %v503
    %658 = vmatprep.subr.bf16.mxu0 0
    %659 = vmatpush2.bf16.msra.mxu0 %v502
    %660 = vmatprep.subr.bf16.mxu0 0
    %661 = vmatpush2.bf16.msra.mxu0 %v501
    %662 = vmatprep.subr.bf16.mxu0 0
    %663 = vmatpush2.bf16.msra.mxu0 %v500
    %664 = vmatprep.subr.bf16.mxu0 0
    %665 = vmatpush2.bf16.msra.mxu0 %v499
    %666 = vmatprep.subr.bf16.mxu0 0
    %667 = vmatpush2.bf16.msra.mxu0 %v498
    %668 = vmatprep.subr.bf16.mxu0 0
    %669 = vmatpush2.bf16.msra.mxu0 %v497
    %670 = vmatprep.subr.bf16.mxu0 0
    %671 = vmatpush2.bf16.msra.mxu0 %v496
    %672 = vmatprep.mubr.bf16.mxu0 %v206
    %673 = vmatmul.mubr.bf16.gmra.mxu0 %v204
    %v674 = vpop.f32.mrf.mxu0
    %v675 = vadd.f32 %v635, %v674
    %v676 = vpop.f32.mrf.mxu0
    %v677 = vpop.f32.mrf.mxu0
    %v678 = vpop.f32.mrf.mxu0
    %679 = vdwg.mxu0
    %680 = vmatprep.subr.bf16.mxu0 0
    %681 = vmatpush1.bf16.msra.mxu0 %v511
    %682 = vmatprep.subr.bf16.mxu0 0
    %683 = vmatpush1.bf16.msra.mxu0 %v510
    %684 = vmatprep.subr.bf16.mxu0 0
    %685 = vmatpush1.bf16.msra.mxu0 %v509
    %686 = vmatprep.subr.bf16.mxu0 0
    %687 = vmatpush1.bf16.msra.mxu0 %v508
    %688 = vmatprep.subr.bf16.mxu0 0
    %689 = vmatpush1.bf16.msra.mxu0 %v507
    %690 = vmatprep.subr.bf16.mxu0 0
    %691 = vmatpush1.bf16.msra.mxu0 %v506
    %692 = vmatprep.subr.bf16.mxu0 0
    %693 = vmatpush1.bf16.msra.mxu0 %v505
    %694 = vmatprep.subr.bf16.mxu0 0
    %695 = vmatpush1.bf16.msra.mxu0 %v504
    %696 = vmatprep.subr.bf16.mxu0 0
    %697 = vmatpush2.bf16.msra.mxu0 %v519
    %698 = vmatprep.subr.bf16.mxu0 0
    %699 = vmatpush2.bf16.msra.mxu0 %v518
    %700 = vmatprep.subr.bf16.mxu0 0
    %701 = vmatpush2.bf16.msra.mxu0 %v517
    %702 = vmatprep.subr.bf16.mxu0 0
    %703 = vmatpush2.bf16.msra.mxu0 %v516
    %704 = vmatprep.subr.bf16.mxu0 0
    %705 = vmatpush2.bf16.msra.mxu0 %v515
    %706 = vmatprep.subr.bf16.mxu0 0
    %707 = vmatpush2.bf16.msra.mxu0 %v514
    %708 = vmatprep.subr.bf16.mxu0 0
    %709 = vmatpush2.bf16.msra.mxu0 %v513
    %710 = vmatprep.subr.bf16.mxu0 0
    %711 = vmatpush2.bf16.msra.mxu0 %v512
    %712 = vmatprep.mubr.bf16.mxu0 %v203
    %713 = vmatmul.mubr.bf16.gmra.mxu0 %v189
    %v714 = vpop.f32.mrf.mxu0
    %v715 = vadd.f32 %v675, %v714
    %v716 = vpop.f32.mrf.mxu0
    %v717 = vpop.f32.mrf.mxu0
    %v718 = vpop.f32.mrf.mxu0
    %719 = vdwg.mxu0
    %720 = vmatprep.subr.bf16.mxu0 0
    %721 = vmatpush1.bf16.msra.mxu0 %v527
    %722 = vmatprep.subr.bf16.mxu0 0
    %723 = vmatpush1.bf16.msra.mxu0 %v526
    %724 = vmatprep.subr.bf16.mxu0 0
    %725 = vmatpush1.bf16.msra.mxu0 %v525
    %726 = vmatprep.subr.bf16.mxu0 0
    %727 = vmatpush1.bf16.msra.mxu0 %v524
    %728 = vmatprep.subr.bf16.mxu0 0
    %729 = vmatpush1.bf16.msra.mxu0 %v523
    %730 = vmatprep.subr.bf16.mxu0 0
    %731 = vmatpush1.bf16.msra.mxu0 %v522
    %732 = vmatprep.subr.bf16.mxu0 0
    %733 = vmatpush1.bf16.msra.mxu0 %v521
    %734 = vmatprep.subr.bf16.mxu0 0
    %735 = vmatpush1.bf16.msra.mxu0 %v520
    %736 = vmatprep.subr.bf16.mxu0 0
    %737 = vmatpush2.bf16.msra.mxu0 %v535
    %738 = vmatprep.subr.bf16.mxu0 0
    %739 = vmatpush2.bf16.msra.mxu0 %v534
    %740 = vmatprep.subr.bf16.mxu0 0
    %741 = vmatpush2.bf16.msra.mxu0 %v533
    %742 = vmatprep.subr.bf16.mxu0 0
    %743 = vmatpush2.bf16.msra.mxu0 %v532
    %744 = vmatprep.subr.bf16.mxu0 0
    %745 = vmatpush2.bf16.msra.mxu0 %v531
    %746 = vmatprep.subr.bf16.mxu0 0
    %747 = vmatpush2.bf16.msra.mxu0 %v530
    %748 = vmatprep.subr.bf16.mxu0 0
    %749 = vmatpush2.bf16.msra.mxu0 %v529
    %750 = vmatprep.subr.bf16.mxu0 0
    %751 = vmatpush2.bf16.msra.mxu0 %v528
    %752 = vmatprep.mubr.bf16.mxu0 %v207
    %753 = vmatmul.mubr.bf16.gmra.mxu0 %v205
    %v754 = vpop.f32.mrf.mxu0
    %v755 = vadd.f32 %v715, %v754
    %v756 = vpop.f32.mrf.mxu0
    %v757 = vpop.f32.mrf.mxu0
    %v758 = vpop.f32.mrf.mxu0
    %759 = vdwg.mxu0
    %v760 = vadd.f32 %v28, %v755
    %vm761 = vcmask 254976
    %762 = vst.msk [vmem:[#allocation2] sm:$0x3] %vm761, %v760
    // Predicated region
    $region26: #{classifier_forward.5} parent=1 // pred_check
      %p763 = pneg %p22
    $region27: #{classifier_forward.5} parent=1 // pred_check_branch
      %765 = sbr.rel (%p763) target = $region29
    $region28: #{classifier_forward.5} parent=1 // pred_region
      %v766 = vld [vmem:[#allocation2] sm:$0x3]
      %v767 = vld [vmem:[%s2] sm:$0x1]
      %v769 = vlaneseq
      %v770 = vshrl.u32 %v769, 7
      %v771 = vsub.s32 0, %v770
      %v772 = vrot.slane %v767, %v771
      %v774 = vadd.f32 %v766, %v772
      %v775 = vmax.f32 %v774, 0.0
      %v776 = vld [vmem:[%s3] sm:$0xff]
      %v777 = vld [vmem:[%s3 + $0x8] sm:$0xff]
      %v778 = vld [vmem:[%s3 + $0x10] sm:$0xff]
      %v779 = vld [vmem:[%s3 + $0x18] sm:$0xff]
      %v780 = vld [vmem:[%s4] sm:$0x1]
      %v782 = vlaneseq
      %v783 = vshrl.u32 %v782, 7
      %v784 = vsub.s32 0, %v783
      %v785 = vrot.slane %v780, %v784
      %vm787 = vcmask 261120
      %v789 = vsel %vm787, %v775, 0
      %791 = vmatprep.subr.mxu0 0.0
      %792 = vmatpush1.msra.mxu0 0.0
      %793 = vmatprep.subr.mxu0 0.0
      %794 = vmatpush1.msra.mxu0 0.0
      %795 = vmatprep.subr.mxu0 0.0
      %796 = vmatpush1.msra.mxu0 0.0
      %797 = vmatprep.subr.mxu0 0.0
      %798 = vmatpush1.msra.mxu0 0.0
      %799 = vmatprep.subr.mxu0 0.0
      %800 = vmatpush1.msra.mxu0 0.0
      %801 = vmatprep.subr.mxu0 0.0
      %802 = vmatpush1.msra.mxu0 0.0
      %803 = vmatprep.subr.mxu0 0.0
      %804 = vmatpush1.msra.mxu0 0.0
      %805 = vmatprep.subr.mxu0 0.0
      %806 = vmatpush1.msra.mxu0 0.0
      %807 = vmatprep.subr.mxu0 0.0
      %808 = vmatpush1.msra.mxu0 0.0
      %809 = vmatprep.subr.mxu0 0.0
      %810 = vmatpush1.msra.mxu0 0.0
      %811 = vmatprep.subr.mxu0 0.0
      %812 = vmatpush1.msra.mxu0 0.0
      %813 = vmatprep.subr.mxu0 0.0
      %814 = vmatpush1.msra.mxu0 0.0
      %815 = vmatprep.subr.mxu0 0.0
      %816 = vmatpush1.msra.mxu0 %v779
      %817 = vmatprep.subr.mxu0 0.0
      %818 = vmatpush1.msra.mxu0 %v778
      %819 = vmatprep.subr.mxu0 0.0
      %820 = vmatpush1.msra.mxu0 %v777
      %821 = vmatprep.subr.mxu0 0.0
      %822 = vmatpush1.msra.mxu0 %v776
      %823 = vmatprep.subr.mxu0 0.0
      %824 = vmatpush2.msra.mxu0 0.0
      %825 = vmatprep.subr.mxu0 0.0
      %826 = vmatpush2.msra.mxu0 0.0
      %827 = vmatprep.subr.mxu0 0.0
      %828 = vmatpush2.msra.mxu0 0.0
      %829 = vmatprep.subr.mxu0 0.0
      %830 = vmatpush2.msra.mxu0 0.0
      %831 = vmatprep.subr.mxu0 0.0
      %832 = vmatpush2.msra.mxu0 0.0
      %833 = vmatprep.subr.mxu0 0.0
      %834 = vmatpush2.msra.mxu0 0.0
      %835 = vmatprep.subr.mxu0 0.0
      %836 = vmatpush2.msra.mxu0 0.0
      %837 = vmatprep.subr.mxu0 0.0
      %838 = vmatpush2.msra.mxu0 0.0
      %839 = vmatprep.subr.mxu0 0.0
      %840 = vmatpush2.msra.mxu0 0.0
      %841 = vmatprep.subr.mxu0 0.0
      %842 = vmatpush2.msra.mxu0 0.0
      %843 = vmatprep.subr.mxu0 0.0
      %844 = vmatpush2.msra.mxu0 0.0
      %845 = vmatprep.subr.mxu0 0.0
      %846 = vmatpush2.msra.mxu0 0.0
      %847 = vmatprep.subr.mxu0 0.0
      %848 = vmatpush2.msra.mxu0 0.0
      %849 = vmatprep.subr.mxu0 0.0
      %850 = vmatpush2.msra.mxu0 0.0
      %851 = vmatprep.subr.mxu0 0.0
      %852 = vmatpush2.msra.mxu0 0.0
      %853 = vmatprep.subr.mxu0 0.0
      %854 = vmatpush2.msra.mxu0 0.0
      %855 = vmatprep.mubr.f32.mxu0 0.0
      %856 = vmatmul.mubr.f32.gmra.mxu0 %v789
      %v857 = vpop.f32.mrf.mxu0
      %v858 = vadd.f32 %v785, %v857
      %v859 = vpop.f32.mrf.mxu0
      %860 = vdwg.mxu0
      %vm861 = vcmask 58368
      %v862 = vsel %vm861, %v858, -inf
      %863 = vmax.xlane.f32.xlu0 %v862
      %v864 = vpop.xlane.xlu0 %863
      %v865 = vsub.f32 %v858, %v864
      %v866 = vmul.f32 %v865, 1.442695
      %v867 = vpow.pop %v866
      %v868 = vsel %vm861, %v867, 0.0
      %869 = vadd.xlane.f32.xlu0 %v868
      %v870 = vpop.xlane.xlu0 %869
      %v871 = vrcp.pop %v870
      %v872 = vmul.f32 %v867, %v871
      %873 = vst.msk [vmem:[#allocation3] sm:$0x3] %vm861, %v872
    $region29: #{classifier_forward.5} parent=1 // pred_fallthru
      _
    // Predicated region
    $region30: #{classifier_forward.5} parent=1 // pred_check
      _
    $region31: #{classifier_forward.5} parent=1 // pred_check_branch
      %875 = sbr.rel (0) target = $region33
    $region32: #{classifier_forward.5} parent=1 // pred_region
      %s877 = ssub.s32 32, 32
      %878 = vsyncadd [#allocation4], %s877
      %s880 = sshll.u32 [#allocation3], 4
      %s881 = int_to_ptr.vmem [resolvable:$true] %s880
      %883 = dma.vmem_to_hbm [thread:$0]  %s881, 32, %s5, [#allocation4]
    $region33: #{classifier_forward.5} parent=1 // pred_fallthru
      _
    // Predicated region
    $region34: #{classifier_forward.5} parent=1 // pred_check
      _
    $region35: #{classifier_forward.5} parent=1 // pred_check_branch
      %885 = sbr.rel (0) target = $region37
    $region36: #{classifier_forward.5} parent=1 // pred_region
      %886 = dma.done [#allocation4], 32
    $region37: #{classifier_forward.5} parent=1 // pred_fallthru
      _
    %887 = vsyncpa [#allocation4], 1

</llo_original>
